<compile_context>
chip_gen: v6e
topology: v6e:2x2x1
jax: 0.10.0
libtpu: 0.0.40
codegen_flags: <defaults>
</compile_context>

<pallas_src>
import functools

import jax
import jax.numpy as jnp
from jax.experimental import pallas as pl
from jax.experimental.pallas import tpu as pltpu


def _resconv_kernel(x_ref, masks_ref, wd_ref, bd_ref, wp_ref, bp_ref, o_ref,
                    *, C, O, H, W, K, Nb):
    """One grid step = Nb batch elements.

    x_ref    : VMEM (Nb, C, HW)   input, spatially flattened (lane-dense)
    masks_ref: VMEM (K*K, HW)     per-tap "same"-padding validity masks (1.0 / 0.0)
    wd_ref   : VMEM (C, K*K)      depthwise weights (tap index along lanes)
    bd_ref   : VMEM (C, 1)        depthwise bias
    wp_ref   : VMEM (O, C)        pointwise weights
    bp_ref   : VMEM (O, 1)        pointwise bias
    o_ref    : VMEM (Nb, O, HW)   output
    """
    HW = H * W
    KK = K * K
    pad = K // 2

    wd = wd_ref[...].astype(jnp.float32)   # (C, KK)
    bd = bd_ref[...].astype(jnp.float32)   # (C, 1)
    wp = wp_ref[...].astype(jnp.float32)   # (O, C)
    bp = bp_ref[...].astype(jnp.float32)   # (O, 1)

    # Interleave per batch element: build depthwise acc -> pointwise dot -> store.
    for b in range(Nb):
        x_b = x_ref[b].astype(jnp.float32)      # (C, HW)
        a = jnp.maximum(x_b, 0.0)               # ReLU (norm2 = Identity)
        acc = x_b + bd                          # residual + depthwise bias
        for k in range(KK):
            i, j = divmod(k, K)
            d = (i - pad) * W + (j - pad)       # flat-lane shift of tap (i, j)
            m = masks_ref[pl.ds(k, 1), :]       # (1, HW), short live range
            # mask * circular roll == zero-padded shift: for any masked-valid lane p,
            # p + d is the exact in-bounds flat index of the tapped pixel; all other
            # lanes are zeroed, so the wrap never leaks wrong pixels.
            shifted = a if d == 0 else pltpu.roll(a, shift=(-d) % HW, axis=1)
            acc = acc + wd[:, k:k + 1] * (m * shifted)
        # Pointwise 1x1 conv: tiny (O,C)x(C,HW) MXU matmul, bias added once.
        out = jnp.dot(wp, acc, preferred_element_type=jnp.float32) + bp
        o_ref[b] = out.astype(o_ref.dtype)


def _choose_batch_block(N, max_nb=8):
    """Batch elements per grid step.

    Keep >= 4 grid steps when the batch permits (>= 2 per v7x TensorCore so BlockSpec
    double-buffering overlaps HBM DMA with compute) and cap the block so per-element
    temporaries stay comfortably inside the vreg file.  VMEM is nowhere near the
    constraint for this kernel (a few hundred KiB per step)."""
    nb = max(1, min(max_nb, N // 4)) if N >= 4 else 1
    nb = max(1, min(nb, N))
    while N % nb:                     # grid must tile the batch exactly
        nb -= 1
    return nb


def res_conv_block(x, wd, bd, wp, bp, *, kernel_size=5, batch_block=None):
    """x: (N, C, H, W); wd: (C,1,K,K); bd: (C,); wp: (O,C,1,1); bp: (O,)."""
    N, C, H, W = x.shape
    O = wp.shape[0]
    K = kernel_size
    assert K % 2 == 1, "padding = kernel_size // 2 is 'same' only for odd kernel sizes"
    HW = H * W
    KK = K * K
    pad = K // 2

    # Lane-dense views; only free reshapes of x (no padded HBM copy, no dtype copy --
    # the kernel casts in VMEM and emits the output directly in x.dtype).
    x_flat = x.reshape(N, C, HW)
    wd2 = wd.reshape(C, KK).astype(jnp.float32)
    bd2 = bd.reshape(C, 1).astype(jnp.float32)
    wp2 = wp.reshape(O, C).astype(jnp.float32)
    bp2 = bp.reshape(O, 1).astype(jnp.float32)

    # Per-tap "same"-padding validity masks: mask[k, p] == 1 iff pixel p shifted by
    # tap k stays inside the image.  Built once; held in VMEM across the grid.
    hh, ww = jnp.divmod(jnp.arange(HW, dtype=jnp.int32), W)
    masks = []
    for i in range(K):
        for j in range(K):
            hi = hh + (i - pad)
            wj = ww + (j - pad)
            masks.append((hi >= 0) & (hi < H) & (wj >= 0) & (wj < W))
    masks = jnp.stack(masks, axis=0).astype(jnp.float32)            # (KK, HW)

    Nb = batch_block if batch_block is not None else _choose_batch_block(N)
    Nb = max(1, min(Nb, N))
    while N % Nb:
        Nb -= 1
    grid = (N // Nb,)

    kernel = functools.partial(_resconv_kernel, C=C, O=O, H=H, W=W, K=K, Nb=Nb)

    out = pl.pallas_call(
        kernel,
        out_shape=jax.ShapeDtypeStruct((N, O, HW), x.dtype),
        grid=grid,
        in_specs=[
            pl.BlockSpec((Nb, C, HW), lambda n: (n, 0, 0)),   # x
            pl.BlockSpec((KK, HW), lambda n: (0, 0)),          # padding masks
            pl.BlockSpec((C, KK), lambda n: (0, 0)),            # depthwise weights
            pl.BlockSpec((C, 1), lambda n: (0, 0)),             # depthwise bias
            pl.BlockSpec((O, C), lambda n: (0, 0)),             # pointwise weights
            pl.BlockSpec((O, 1), lambda n: (0, 0)),             # pointwise bias
        ],
        out_specs=pl.BlockSpec((Nb, O, HW), lambda n: (n, 0, 0)),
        compiler_params=pltpu.CompilerParams(
            dimension_semantics=("parallel",),
            vmem_limit_bytes=32 * 1024 * 1024,   # safe on v5e/v6e (128 MiB) and v7x (64 MiB)
        ),
    )(x_flat, masks, wd2, bd2, wp2, bp2)

    return out.reshape(N, O, H, W)


def _reference(x, wd, bd, wp, bp, *, kernel_size=5):
    """Pure-JAX reference mirroring the PyTorch forward (with default args)."""
    C = x.shape[1]
    O = wp.shape[0]
    pad = kernel_size // 2
    a = jnp.maximum(x, 0.0)
    dw = jax.lax.conv_general_dilated(
        a, wd.reshape(C, 1, kernel_size, kernel_size),
        window_strides=(1, 1), padding=((pad, pad), (pad, pad)),
        dimension_numbers=("NCHW", "OIHW", "NCHW"), feature_group_count=C)
    dw = dw + bd[None, :, None, None]
    r = dw + x
    y = jnp.einsum("oc,nchw->nohw", wp.reshape(O, C), r) + bp[None, :, None, None]
    return y


if __name__ == "__main__":
    # Small shapes consistent with the module: in_chan=4, out_chan=8, kernel_size=5.
    # N=4 gives a 4-step grid (>=2 steps per v7x TensorCore for pipelining).
    N, C, O, H, W, K = 4, 4, 8, 16, 16, 5

    key = jax.random.PRNGKey(0)
    kx, kwd, kbd, kwp, kbp = jax.random.split(key, 5)

    x = jax.random.normal(kx, (N, C, H, W), jnp.float32)
    # conv2_depthwise: Conv2d(C, C, 5, padding=2, groups=C, bias=True) -> weight (C,1,5,5)
    wd = 0.1 * jax.random.normal(kwd, (C, 1, K, K), jnp.float32)
    bd = 0.1 * jax.random.normal(kbd, (C,), jnp.float32)
    # conv2_pointwise: Conv2d(C, O, 1, bias=True) -> weight (O,C,1,1)
    wp = 0.1 * jax.random.normal(kwp, (O, C, 1, 1), jnp.float32)
    bp = 0.1 * jax.random.normal(kbp, (O,), jnp.float32)

    out = jax.block_until_ready(res_conv_block(x, wd, bd, wp, bp, kernel_size=K))
    ref = _reference(x, wd, bd, wp, bp, kernel_size=K)

    assert out.shape == (N, O, H, W)
    # All-f32 path (VPU depthwise + f32 MXU pointwise); tolerance covers summation
    # order and the MXU's internal f32 pass decomposition.
    err = float(jnp.max(jnp.abs(out - ref)))
    assert jnp.allclose(out, ref, rtol=1e-3, atol=1e-3), err

    print("KERNEL_OK")
</pallas_src>

<mosaic_0001>
module attributes {stable_mosaic.version = 11 : i64} {
  func.func @_resconv_kernel(%arg0: i32, %arg1: memref<1x4x256xf32, #tpu.memory_space<vmem>>, %arg2: memref<25x256xf32, #tpu.memory_space<vmem>>, %arg3: memref<4x25xf32, #tpu.memory_space<vmem>>, %arg4: memref<4x1xf32, #tpu.memory_space<vmem>>, %arg5: memref<8x4xf32, #tpu.memory_space<vmem>>, %arg6: memref<8x1xf32, #tpu.memory_space<vmem>>, %arg7: memref<1x8x256xf32, #tpu.memory_space<vmem>>) attributes {dimension_semantics = [#tpu.dimension_semantics<parallel>], iteration_bounds = array<i64: 4>, scalar_prefetch = 0 : i64, scratch_operands = 0 : i64, tpu.core_type = #tpu.core_type<tc>, window_params = [{transform_indices = @transform_0, window_bounds = array<i64: 1, 4, 256>}, {pipeline_mode = #tpu.pipeline_mode<synchronous>, transform_indices = @transform_1, window_bounds = array<i64: 25, 256>}, {pipeline_mode = #tpu.pipeline_mode<synchronous>, transform_indices = @transform_2, window_bounds = array<i64: 4, 25>}, {pipeline_mode = #tpu.pipeline_mode<synchronous>, transform_indices = @transform_3, window_bounds = array<i64: 4, 1>}, {pipeline_mode = #tpu.pipeline_mode<synchronous>, transform_indices = @transform_4, window_bounds = array<i64: 8, 4>}, {pipeline_mode = #tpu.pipeline_mode<synchronous>, transform_indices = @transform_5, window_bounds = array<i64: 8, 1>}, {transform_indices = @transform_6, window_bounds = array<i64: 1, 8, 256>}]} {
    %c0 = arith.constant 0 : index
    %c0_0 = arith.constant 0 : index
    %0 = vector.load %arg3[%c0, %c0_0] : memref<4x25xf32, #tpu.memory_space<vmem>>, vector<4x25xf32>
    %c0_1 = arith.constant 0 : index
    %c0_2 = arith.constant 0 : index
    %1 = vector.load %arg4[%c0_1, %c0_2] : memref<4x1xf32, #tpu.memory_space<vmem>>, vector<4x1xf32>
    %c0_3 = arith.constant 0 : index
    %c0_4 = arith.constant 0 : index
    %2 = vector.load %arg5[%c0_3, %c0_4] : memref<8x4xf32, #tpu.memory_space<vmem>>, vector<8x4xf32>
    %c0_5 = arith.constant 0 : index
    %c0_6 = arith.constant 0 : index
    %3 = vector.load %arg6[%c0_5, %c0_6] : memref<8x1xf32, #tpu.memory_space<vmem>>, vector<8x1xf32>
    %c0_7 = arith.constant 0 : index
    %c0_8 = arith.constant 0 : index
    %c0_9 = arith.constant 0 : index
    %4 = vector.load %arg1[%c0_7, %c0_8, %c0_9] : memref<1x4x256xf32, #tpu.memory_space<vmem>>, vector<1x4x256xf32>
    %5 = vector.shape_cast %4 : vector<1x4x256xf32> to vector<4x256xf32>
    %cst = arith.constant 0.000000e+00 : f32
    %6 = vector.broadcast %cst : f32 to vector<4x256xf32>
    %7 = arith.maximumf %5, %6 : vector<4x256xf32>
    %8 = vector.broadcast %1 : vector<4x1xf32> to vector<4x256xf32>
    %9 = arith.addf %5, %8 : vector<4x256xf32>
    %c0_10 = arith.constant 0 : index
    %c0_11 = arith.constant 0 : index
    %10 = vector.load %arg2[%c0_10, %c0_11] : memref<25x256xf32, #tpu.memory_space<vmem>>, vector<1x256xf32>
    %c34_i32 = arith.constant 34 : i32
    %11 = tpu.dynamic_rotate %7 by %c34_i32 dim 1 : vector<4x256xf32>, i32 -> vector<4x256xf32>
    %12 = vector.extract_strided_slice %0 {offsets = [0, 0], sizes = [4, 1], strides = [1, 1]} : vector<4x25xf32> to vector<4x1xf32>
    %13 = vector.broadcast %10 : vector<1x256xf32> to vector<4x256xf32>
    %14 = arith.mulf %13, %11 : vector<4x256xf32>
    %15 = vector.broadcast %12 : vector<4x1xf32> to vector<4x256xf32>
    %16 = arith.mulf %15, %14 : vector<4x256xf32>
    %17 = arith.addf %9, %16 : vector<4x256xf32>
    %c1 = arith.constant 1 : index
    %c0_12 = arith.constant 0 : index
    %18 = vector.load %arg2[%c1, %c0_12] : memref<25x256xf32, #tpu.memory_space<vmem>>, vector<1x256xf32>
    %c33_i32 = arith.constant 33 : i32
    %19 = tpu.dynamic_rotate %7 by %c33_i32 dim 1 : vector<4x256xf32>, i32 -> vector<4x256xf32>
    %20 = vector.extract_strided_slice %0 {offsets = [0, 1], sizes = [4, 1], strides = [1, 1]} : vector<4x25xf32> to vector<4x1xf32>
    %21 = vector.broadcast %18 : vector<1x256xf32> to vector<4x256xf32>
    %22 = arith.mulf %21, %19 : vector<4x256xf32>
    %23 = vector.broadcast %20 : vector<4x1xf32> to vector<4x256xf32>
    %24 = arith.mulf %23, %22 : vector<4x256xf32>
    %25 = arith.addf %17, %24 : vector<4x256xf32>
    %c2 = arith.constant 2 : index
    %c0_13 = arith.constant 0 : index
    %26 = vector.load %arg2[%c2, %c0_13] : memref<25x256xf32, #tpu.memory_space<vmem>>, vector<1x256xf32>
    %c32_i32 = arith.constant 32 : i32
    %27 = tpu.dynamic_rotate %7 by %c32_i32 dim 1 : vector<4x256xf32>, i32 -> vector<4x256xf32>
    %28 = vector.extract_strided_slice %0 {offsets = [0, 2], sizes = [4, 1], strides = [1, 1]} : vector<4x25xf32> to vector<4x1xf32>
    %29 = vector.broadcast %26 : vector<1x256xf32> to vector<4x256xf32>
    %30 = arith.mulf %29, %27 : vector<4x256xf32>
    %31 = vector.broadcast %28 : vector<4x1xf32> to vector<4x256xf32>
    %32 = arith.mulf %31, %30 : vector<4x256xf32>
    %33 = arith.addf %25, %32 : vector<4x256xf32>
    %c3 = arith.constant 3 : index
    %c0_14 = arith.constant 0 : index
    %34 = vector.load %arg2[%c3, %c0_14] : memref<25x256xf32, #tpu.memory_space<vmem>>, vector<1x256xf32>
    %c31_i32 = arith.constant 31 : i32
    %35 = tpu.dynamic_rotate %7 by %c31_i32 dim 1 : vector<4x256xf32>, i32 -> vector<4x256xf32>
    %36 = vector.extract_strided_slice %0 {offsets = [0, 3], sizes = [4, 1], strides = [1, 1]} : vector<4x25xf32> to vector<4x1xf32>
    %37 = vector.broadcast %34 : vector<1x256xf32> to vector<4x256xf32>
    %38 = arith.mulf %37, %35 : vector<4x256xf32>
    %39 = vector.broadcast %36 : vector<4x1xf32> to vector<4x256xf32>
    %40 = arith.mulf %39, %38 : vector<4x256xf32>
    %41 = arith.addf %33, %40 : vector<4x256xf32>
    %c4 = arith.constant 4 : index
    %c0_15 = arith.constant 0 : index
    %42 = vector.load %arg2[%c4, %c0_15] : memref<25x256xf32, #tpu.memory_space<vmem>>, vector<1x256xf32>
    %c30_i32 = arith.constant 30 : i32
    %43 = tpu.dynamic_rotate %7 by %c30_i32 dim 1 : vector<4x256xf32>, i32 -> vector<4x256xf32>
    %44 = vector.extract_strided_slice %0 {offsets = [0, 4], sizes = [4, 1], strides = [1, 1]} : vector<4x25xf32> to vector<4x1xf32>
    %45 = vector.broadcast %42 : vector<1x256xf32> to vector<4x256xf32>
    %46 = arith.mulf %45, %43 : vector<4x256xf32>
    %47 = vector.broadcast %44 : vector<4x1xf32> to vector<4x256xf32>
    %48 = arith.mulf %47, %46 : vector<4x256xf32>
    %49 = arith.addf %41, %48 : vector<4x256xf32>
    %c5 = arith.constant 5 : index
    %c0_16 = arith.constant 0 : index
    %50 = vector.load %arg2[%c5, %c0_16] : memref<25x256xf32, #tpu.memory_space<vmem>>, vector<1x256xf32>
    %c18_i32 = arith.constant 18 : i32
    %51 = tpu.dynamic_rotate %7 by %c18_i32 dim 1 : vector<4x256xf32>, i32 -> vector<4x256xf32>
    %52 = vector.extract_strided_slice %0 {offsets = [0, 5], sizes = [4, 1], strides = [1, 1]} : vector<4x25xf32> to vector<4x1xf32>
    %53 = vector.broadcast %50 : vector<1x256xf32> to vector<4x256xf32>
    %54 = arith.mulf %53, %51 : vector<4x256xf32>
    %55 = vector.broadcast %52 : vector<4x1xf32> to vector<4x256xf32>
    %56 = arith.mulf %55, %54 : vector<4x256xf32>
    %57 = arith.addf %49, %56 : vector<4x256xf32>
    %c6 = arith.constant 6 : index
    %c0_17 = arith.constant 0 : index
    %58 = vector.load %arg2[%c6, %c0_17] : memref<25x256xf32, #tpu.memory_space<vmem>>, vector<1x256xf32>
    %c17_i32 = arith.constant 17 : i32
    %59 = tpu.dynamic_rotate %7 by %c17_i32 dim 1 : vector<4x256xf32>, i32 -> vector<4x256xf32>
    %60 = vector.extract_strided_slice %0 {offsets = [0, 6], sizes = [4, 1], strides = [1, 1]} : vector<4x25xf32> to vector<4x1xf32>
    %61 = vector.broadcast %58 : vector<1x256xf32> to vector<4x256xf32>
    %62 = arith.mulf %61, %59 : vector<4x256xf32>
    %63 = vector.broadcast %60 : vector<4x1xf32> to vector<4x256xf32>
    %64 = arith.mulf %63, %62 : vector<4x256xf32>
    %65 = arith.addf %57, %64 : vector<4x256xf32>
    %c7 = arith.constant 7 : index
    %c0_18 = arith.constant 0 : index
    %66 = vector.load %arg2[%c7, %c0_18] : memref<25x256xf32, #tpu.memory_space<vmem>>, vector<1x256xf32>
    %c16_i32 = arith.constant 16 : i32
    %67 = tpu.dynamic_rotate %7 by %c16_i32 dim 1 : vector<4x256xf32>, i32 -> vector<4x256xf32>
    %68 = vector.extract_strided_slice %0 {offsets = [0, 7], sizes = [4, 1], strides = [1, 1]} : vector<4x25xf32> to vector<4x1xf32>
    %69 = vector.broadcast %66 : vector<1x256xf32> to vector<4x256xf32>
    %70 = arith.mulf %69, %67 : vector<4x256xf32>
    %71 = vector.broadcast %68 : vector<4x1xf32> to vector<4x256xf32>
    %72 = arith.mulf %71, %70 : vector<4x256xf32>
    %73 = arith.addf %65, %72 : vector<4x256xf32>
    %c8 = arith.constant 8 : index
    %c0_19 = arith.constant 0 : index
    %74 = vector.load %arg2[%c8, %c0_19] : memref<25x256xf32, #tpu.memory_space<vmem>>, vector<1x256xf32>
    %c15_i32 = arith.constant 15 : i32
    %75 = tpu.dynamic_rotate %7 by %c15_i32 dim 1 : vector<4x256xf32>, i32 -> vector<4x256xf32>
    %76 = vector.extract_strided_slice %0 {offsets = [0, 8], sizes = [4, 1], strides = [1, 1]} : vector<4x25xf32> to vector<4x1xf32>
    %77 = vector.broadcast %74 : vector<1x256xf32> to vector<4x256xf32>
    %78 = arith.mulf %77, %75 : vector<4x256xf32>
    %79 = vector.broadcast %76 : vector<4x1xf32> to vector<4x256xf32>
    %80 = arith.mulf %79, %78 : vector<4x256xf32>
    %81 = arith.addf %73, %80 : vector<4x256xf32>
    %c9 = arith.constant 9 : index
    %c0_20 = arith.constant 0 : index
    %82 = vector.load %arg2[%c9, %c0_20] : memref<25x256xf32, #tpu.memory_space<vmem>>, vector<1x256xf32>
    %c14_i32 = arith.constant 14 : i32
    %83 = tpu.dynamic_rotate %7 by %c14_i32 dim 1 : vector<4x256xf32>, i32 -> vector<4x256xf32>
    %84 = vector.extract_strided_slice %0 {offsets = [0, 9], sizes = [4, 1], strides = [1, 1]} : vector<4x25xf32> to vector<4x1xf32>
    %85 = vector.broadcast %82 : vector<1x256xf32> to vector<4x256xf32>
    %86 = arith.mulf %85, %83 : vector<4x256xf32>
    %87 = vector.broadcast %84 : vector<4x1xf32> to vector<4x256xf32>
    %88 = arith.mulf %87, %86 : vector<4x256xf32>
    %89 = arith.addf %81, %88 : vector<4x256xf32>
    %c10 = arith.constant 10 : index
    %c0_21 = arith.constant 0 : index
    %90 = vector.load %arg2[%c10, %c0_21] : memref<25x256xf32, #tpu.memory_space<vmem>>, vector<1x256xf32>
    %c2_i32 = arith.constant 2 : i32
    %91 = tpu.dynamic_rotate %7 by %c2_i32 dim 1 : vector<4x256xf32>, i32 -> vector<4x256xf32>
    %92 = vector.extract_strided_slice %0 {offsets = [0, 10], sizes = [4, 1], strides = [1, 1]} : vector<4x25xf32> to vector<4x1xf32>
    %93 = vector.broadcast %90 : vector<1x256xf32> to vector<4x256xf32>
    %94 = arith.mulf %93, %91 : vector<4x256xf32>
    %95 = vector.broadcast %92 : vector<4x1xf32> to vector<4x256xf32>
    %96 = arith.mulf %95, %94 : vector<4x256xf32>
    %97 = arith.addf %89, %96 : vector<4x256xf32>
    %c11 = arith.constant 11 : index
    %c0_22 = arith.constant 0 : index
    %98 = vector.load %arg2[%c11, %c0_22] : memref<25x256xf32, #tpu.memory_space<vmem>>, vector<1x256xf32>
    %c1_i32 = arith.constant 1 : i32
    %99 = tpu.dynamic_rotate %7 by %c1_i32 dim 1 : vector<4x256xf32>, i32 -> vector<4x256xf32>
    %100 = vector.extract_strided_slice %0 {offsets = [0, 11], sizes = [4, 1], strides = [1, 1]} : vector<4x25xf32> to vector<4x1xf32>
    %101 = vector.broadcast %98 : vector<1x256xf32> to vector<4x256xf32>
    %102 = arith.mulf %101, %99 : vector<4x256xf32>
    %103 = vector.broadcast %100 : vector<4x1xf32> to vector<4x256xf32>
    %104 = arith.mulf %103, %102 : vector<4x256xf32>
    %105 = arith.addf %97, %104 : vector<4x256xf32>
    %c12 = arith.constant 12 : index
    %c0_23 = arith.constant 0 : index
    %106 = vector.load %arg2[%c12, %c0_23] : memref<25x256xf32, #tpu.memory_space<vmem>>, vector<1x256xf32>
    %107 = vector.extract_strided_slice %0 {offsets = [0, 12], sizes = [4, 1], strides = [1, 1]} : vector<4x25xf32> to vector<4x1xf32>
    %108 = vector.broadcast %106 : vector<1x256xf32> to vector<4x256xf32>
    %109 = arith.mulf %108, %7 : vector<4x256xf32>
    %110 = vector.broadcast %107 : vector<4x1xf32> to vector<4x256xf32>
    %111 = arith.mulf %110, %109 : vector<4x256xf32>
    %112 = arith.addf %105, %111 : vector<4x256xf32>
    %c13 = arith.constant 13 : index
    %c0_24 = arith.constant 0 : index
    %113 = vector.load %arg2[%c13, %c0_24] : memref<25x256xf32, #tpu.memory_space<vmem>>, vector<1x256xf32>
    %c255_i32 = arith.constant 255 : i32
    %114 = tpu.dynamic_rotate %7 by %c255_i32 dim 1 : vector<4x256xf32>, i32 -> vector<4x256xf32>
    %115 = vector.extract_strided_slice %0 {offsets = [0, 13], sizes = [4, 1], strides = [1, 1]} : vector<4x25xf32> to vector<4x1xf32>
    %116 = vector.broadcast %113 : vector<1x256xf32> to vector<4x256xf32>
    %117 = arith.mulf %116, %114 : vector<4x256xf32>
    %118 = vector.broadcast %115 : vector<4x1xf32> to vector<4x256xf32>
    %119 = arith.mulf %118, %117 : vector<4x256xf32>
    %120 = arith.addf %112, %119 : vector<4x256xf32>
    %c14 = arith.constant 14 : index
    %c0_25 = arith.constant 0 : index
    %121 = vector.load %arg2[%c14, %c0_25] : memref<25x256xf32, #tpu.memory_space<vmem>>, vector<1x256xf32>
    %c254_i32 = arith.constant 254 : i32
    %122 = tpu.dynamic_rotate %7 by %c254_i32 dim 1 : vector<4x256xf32>, i32 -> vector<4x256xf32>
    %123 = vector.extract_strided_slice %0 {offsets = [0, 14], sizes = [4, 1], strides = [1, 1]} : vector<4x25xf32> to vector<4x1xf32>
    %124 = vector.broadcast %121 : vector<1x256xf32> to vector<4x256xf32>
    %125 = arith.mulf %124, %122 : vector<4x256xf32>
    %126 = vector.broadcast %123 : vector<4x1xf32> to vector<4x256xf32>
    %127 = arith.mulf %126, %125 : vector<4x256xf32>
    %128 = arith.addf %120, %127 : vector<4x256xf32>
    %c15 = arith.constant 15 : index
    %c0_26 = arith.constant 0 : index
    %129 = vector.load %arg2[%c15, %c0_26] : memref<25x256xf32, #tpu.memory_space<vmem>>, vector<1x256xf32>
    %c242_i32 = arith.constant 242 : i32
    %130 = tpu.dynamic_rotate %7 by %c242_i32 dim 1 : vector<4x256xf32>, i32 -> vector<4x256xf32>
    %131 = vector.extract_strided_slice %0 {offsets = [0, 15], sizes = [4, 1], strides = [1, 1]} : vector<4x25xf32> to vector<4x1xf32>
    %132 = vector.broadcast %129 : vector<1x256xf32> to vector<4x256xf32>
    %133 = arith.mulf %132, %130 : vector<4x256xf32>
    %134 = vector.broadcast %131 : vector<4x1xf32> to vector<4x256xf32>
    %135 = arith.mulf %134, %133 : vector<4x256xf32>
    %136 = arith.addf %128, %135 : vector<4x256xf32>
    %c16 = arith.constant 16 : index
    %c0_27 = arith.constant 0 : index
    %137 = vector.load %arg2[%c16, %c0_27] : memref<25x256xf32, #tpu.memory_space<vmem>>, vector<1x256xf32>
    %c241_i32 = arith.constant 241 : i32
    %138 = tpu.dynamic_rotate %7 by %c241_i32 dim 1 : vector<4x256xf32>, i32 -> vector<4x256xf32>
    %139 = vector.extract_strided_slice %0 {offsets = [0, 16], sizes = [4, 1], strides = [1, 1]} : vector<4x25xf32> to vector<4x1xf32>
    %140 = vector.broadcast %137 : vector<1x256xf32> to vector<4x256xf32>
    %141 = arith.mulf %140, %138 : vector<4x256xf32>
    %142 = vector.broadcast %139 : vector<4x1xf32> to vector<4x256xf32>
    %143 = arith.mulf %142, %141 : vector<4x256xf32>
    %144 = arith.addf %136, %143 : vector<4x256xf32>
    %c17 = arith.constant 17 : index
    %c0_28 = arith.constant 0 : index
    %145 = vector.load %arg2[%c17, %c0_28] : memref<25x256xf32, #tpu.memory_space<vmem>>, vector<1x256xf32>
    %c240_i32 = arith.constant 240 : i32
    %146 = tpu.dynamic_rotate %7 by %c240_i32 dim 1 : vector<4x256xf32>, i32 -> vector<4x256xf32>
    %147 = vector.extract_strided_slice %0 {offsets = [0, 17], sizes = [4, 1], strides = [1, 1]} : vector<4x25xf32> to vector<4x1xf32>
    %148 = vector.broadcast %145 : vector<1x256xf32> to vector<4x256xf32>
    %149 = arith.mulf %148, %146 : vector<4x256xf32>
    %150 = vector.broadcast %147 : vector<4x1xf32> to vector<4x256xf32>
    %151 = arith.mulf %150, %149 : vector<4x256xf32>
    %152 = arith.addf %144, %151 : vector<4x256xf32>
    %c18 = arith.constant 18 : index
    %c0_29 = arith.constant 0 : index
    %153 = vector.load %arg2[%c18, %c0_29] : memref<25x256xf32, #tpu.memory_space<vmem>>, vector<1x256xf32>
    %c239_i32 = arith.constant 239 : i32
    %154 = tpu.dynamic_rotate %7 by %c239_i32 dim 1 : vector<4x256xf32>, i32 -> vector<4x256xf32>
    %155 = vector.extract_strided_slice %0 {offsets = [0, 18], sizes = [4, 1], strides = [1, 1]} : vector<4x25xf32> to vector<4x1xf32>
    %156 = vector.broadcast %153 : vector<1x256xf32> to vector<4x256xf32>
    %157 = arith.mulf %156, %154 : vector<4x256xf32>
    %158 = vector.broadcast %155 : vector<4x1xf32> to vector<4x256xf32>
    %159 = arith.mulf %158, %157 : vector<4x256xf32>
    %160 = arith.addf %152, %159 : vector<4x256xf32>
    %c19 = arith.constant 19 : index
    %c0_30 = arith.constant 0 : index
    %161 = vector.load %arg2[%c19, %c0_30] : memref<25x256xf32, #tpu.memory_space<vmem>>, vector<1x256xf32>
    %c238_i32 = arith.constant 238 : i32
    %162 = tpu.dynamic_rotate %7 by %c238_i32 dim 1 : vector<4x256xf32>, i32 -> vector<4x256xf32>
    %163 = vector.extract_strided_slice %0 {offsets = [0, 19], sizes = [4, 1], strides = [1, 1]} : vector<4x25xf32> to vector<4x1xf32>
    %164 = vector.broadcast %161 : vector<1x256xf32> to vector<4x256xf32>
    %165 = arith.mulf %164, %162 : vector<4x256xf32>
    %166 = vector.broadcast %163 : vector<4x1xf32> to vector<4x256xf32>
    %167 = arith.mulf %166, %165 : vector<4x256xf32>
    %168 = arith.addf %160, %167 : vector<4x256xf32>
    %c20 = arith.constant 20 : index
    %c0_31 = arith.constant 0 : index
    %169 = vector.load %arg2[%c20, %c0_31] : memref<25x256xf32, #tpu.memory_space<vmem>>, vector<1x256xf32>
    %c226_i32 = arith.constant 226 : i32
    %170 = tpu.dynamic_rotate %7 by %c226_i32 dim 1 : vector<4x256xf32>, i32 -> vector<4x256xf32>
    %171 = vector.extract_strided_slice %0 {offsets = [0, 20], sizes = [4, 1], strides = [1, 1]} : vector<4x25xf32> to vector<4x1xf32>
    %172 = vector.broadcast %169 : vector<1x256xf32> to vector<4x256xf32>
    %173 = arith.mulf %172, %170 : vector<4x256xf32>
    %174 = vector.broadcast %171 : vector<4x1xf32> to vector<4x256xf32>
    %175 = arith.mulf %174, %173 : vector<4x256xf32>
    %176 = arith.addf %168, %175 : vector<4x256xf32>
    %c21 = arith.constant 21 : index
    %c0_32 = arith.constant 0 : index
    %177 = vector.load %arg2[%c21, %c0_32] : memref<25x256xf32, #tpu.memory_space<vmem>>, vector<1x256xf32>
    %c225_i32 = arith.constant 225 : i32
    %178 = tpu.dynamic_rotate %7 by %c225_i32 dim 1 : vector<4x256xf32>, i32 -> vector<4x256xf32>
    %179 = vector.extract_strided_slice %0 {offsets = [0, 21], sizes = [4, 1], strides = [1, 1]} : vector<4x25xf32> to vector<4x1xf32>
    %180 = vector.broadcast %177 : vector<1x256xf32> to vector<4x256xf32>
    %181 = arith.mulf %180, %178 : vector<4x256xf32>
    %182 = vector.broadcast %179 : vector<4x1xf32> to vector<4x256xf32>
    %183 = arith.mulf %182, %181 : vector<4x256xf32>
    %184 = arith.addf %176, %183 : vector<4x256xf32>
    %c22 = arith.constant 22 : index
    %c0_33 = arith.constant 0 : index
    %185 = vector.load %arg2[%c22, %c0_33] : memref<25x256xf32, #tpu.memory_space<vmem>>, vector<1x256xf32>
    %c224_i32 = arith.constant 224 : i32
    %186 = tpu.dynamic_rotate %7 by %c224_i32 dim 1 : vector<4x256xf32>, i32 -> vector<4x256xf32>
    %187 = vector.extract_strided_slice %0 {offsets = [0, 22], sizes = [4, 1], strides = [1, 1]} : vector<4x25xf32> to vector<4x1xf32>
    %188 = vector.broadcast %185 : vector<1x256xf32> to vector<4x256xf32>
    %189 = arith.mulf %188, %186 : vector<4x256xf32>
    %190 = vector.broadcast %187 : vector<4x1xf32> to vector<4x256xf32>
    %191 = arith.mulf %190, %189 : vector<4x256xf32>
    %192 = arith.addf %184, %191 : vector<4x256xf32>
    %c23 = arith.constant 23 : index
    %c0_34 = arith.constant 0 : index
    %193 = vector.load %arg2[%c23, %c0_34] : memref<25x256xf32, #tpu.memory_space<vmem>>, vector<1x256xf32>
    %c223_i32 = arith.constant 223 : i32
    %194 = tpu.dynamic_rotate %7 by %c223_i32 dim 1 : vector<4x256xf32>, i32 -> vector<4x256xf32>
    %195 = vector.extract_strided_slice %0 {offsets = [0, 23], sizes = [4, 1], strides = [1, 1]} : vector<4x25xf32> to vector<4x1xf32>
    %196 = vector.broadcast %193 : vector<1x256xf32> to vector<4x256xf32>
    %197 = arith.mulf %196, %194 : vector<4x256xf32>
    %198 = vector.broadcast %195 : vector<4x1xf32> to vector<4x256xf32>
    %199 = arith.mulf %198, %197 : vector<4x256xf32>
    %200 = arith.addf %192, %199 : vector<4x256xf32>
    %c24 = arith.constant 24 : index
    %c0_35 = arith.constant 0 : index
    %201 = vector.load %arg2[%c24, %c0_35] : memref<25x256xf32, #tpu.memory_space<vmem>>, vector<1x256xf32>
    %c222_i32 = arith.constant 222 : i32
    %202 = tpu.dynamic_rotate %7 by %c222_i32 dim 1 : vector<4x256xf32>, i32 -> vector<4x256xf32>
    %203 = vector.extract_strided_slice %0 {offsets = [0, 24], sizes = [4, 1], strides = [1, 1]} : vector<4x25xf32> to vector<4x1xf32>
    %204 = vector.broadcast %201 : vector<1x256xf32> to vector<4x256xf32>
    %205 = arith.mulf %204, %202 : vector<4x256xf32>
    %206 = vector.broadcast %203 : vector<4x1xf32> to vector<4x256xf32>
    %207 = arith.mulf %206, %205 : vector<4x256xf32>
    %208 = arith.addf %200, %207 : vector<4x256xf32>
    %cst_36 = arith.constant dense<0.000000e+00> : vector<8x256xf32>
    %209 = tpu.matmul %2, %208, %cst_36 {dimension_numbers = #tpu.dot_dimension_numbers<[1], [0], [0], [1], [0, 0, 1, 1], [], []>} : vector<8x4xf32>, vector<4x256xf32>, vector<8x256xf32> -> vector<8x256xf32>
    %210 = vector.broadcast %3 : vector<8x1xf32> to vector<8x256xf32>
    %211 = arith.addf %209, %210 : vector<8x256xf32>
    %c0_37 = arith.constant 0 : index
    %c0_38 = arith.constant 0 : index
    %c0_39 = arith.constant 0 : index
    %212 = vector.load %arg7[%c0_37, %c0_38, %c0_39] : memref<1x8x256xf32, #tpu.memory_space<vmem>>, vector<1x8x256xf32>
    %213 = vector.shape_cast %212 : vector<1x8x256xf32> to vector<8x256xf32>
    %214 = vector.shape_cast %211 : vector<8x256xf32> to vector<1x8x256xf32>
    tpu.vector_store %arg7[%c0_37, %c0_38, %c0_39], %214 {strides = array<i32>} : memref<1x8x256xf32, #tpu.memory_space<vmem>>, vector<1x8x256xf32>,
    return
  }
  func.func @transform_0(%arg0: i32) -> (i32, i32, i32) {
    %c0_i32 = arith.constant 0 : i32
    %c0_i32_0 = arith.constant 0 : i32
    %c0_i32_1 = arith.constant 0 : i32
    return %arg0, %c0_i32, %c0_i32_0 : i32, i32, i32
  }
  func.func @transform_1(%arg0: i32) -> (i32, i32) {
    %c0_i32 = arith.constant 0 : i32
    %c0_i32_0 = arith.constant 0 : i32
    %c0_i32_1 = arith.constant 0 : i32
    return %c0_i32, %c0_i32_0 : i32, i32
  }
  func.func @transform_2(%arg0: i32) -> (i32, i32) {
    %c0_i32 = arith.constant 0 : i32
    %c0_i32_0 = arith.constant 0 : i32
    %c0_i32_1 = arith.constant 0 : i32
    return %c0_i32, %c0_i32_0 : i32, i32
  }
  func.func @transform_3(%arg0: i32) -> (i32, i32) {
    %c0_i32 = arith.constant 0 : i32
    %c0_i32_0 = arith.constant 0 : i32
    %c0_i32_1 = arith.constant 0 : i32
    return %c0_i32, %c0_i32_0 : i32, i32
  }
  func.func @transform_4(%arg0: i32) -> (i32, i32) {
    %c0_i32 = arith.constant 0 : i32
    %c0_i32_0 = arith.constant 0 : i32
    %c0_i32_1 = arith.constant 0 : i32
    return %c0_i32, %c0_i32_0 : i32, i32
  }
  func.func @transform_5(%arg0: i32) -> (i32, i32) {
    %c0_i32 = arith.constant 0 : i32
    %c0_i32_0 = arith.constant 0 : i32
    %c0_i32_1 = arith.constant 0 : i32
    return %c0_i32, %c0_i32_0 : i32, i32
  }
  func.func @transform_6(%arg0: i32) -> (i32, i32, i32) {
    %c0_i32 = arith.constant 0 : i32
    %c0_i32_0 = arith.constant 0 : i32
    %c0_i32_1 = arith.constant 0 : i32
    return %arg0, %c0_i32, %c0_i32_0 : i32, i32, i32
  }
}

</mosaic_0001>

<llo_original>
// kernel: tpu_custom_call.1
$region0: #{tpu_custom_call.1}
  #allocation0 [shape = 'u32[]', space=smem, size = 0x4, offset = 0x4, fixed_abs, tag = 'smem constant byte address 0x4 - core index']
  #allocation1 [shape = 'u32[144,128]{1,0:T(1,128)}', space=vmem, size = 0x12000, scoped, tag = 'internal scratch']
  %s0 = inlined_call_operand.hbm [shape: f32[4,4,256], index: 0, kind: input, shape index: {}]
  %s1 = inlined_call_operand.hbm [shape: f32[25,256], index: 1, kind: input, shape index: {}]
  %s2 = inlined_call_operand.vmem [shape: f32[4,25], index: 2, kind: input, shape index: {}]
  %s3 = inlined_call_operand.vmem [shape: f32[4,1], index: 3, kind: input, shape index: {}]
  %s4 = inlined_call_operand.vmem [shape: f32[8,4], index: 4, kind: input, shape index: {}]
  %s5 = inlined_call_operand.vmem [shape: f32[8,1], index: 5, kind: input, shape index: {}]
  %s6 = inlined_call_operand.hbm [shape: f32[4,8,256], index: 6, kind: output, shape index: {}]
  %s7 = sld [smem:[#allocation0]]
  $region65: #{tpu_custom_call.1} parent=0
    _
  %s9 = ssub.s32 1, %s7
  %s10 = scalar_select 0, %s9, %s7
  $region1: #{tpu_custom_call.1} parent=0
    #allocation2 [shape = 'u8[8192]{0}', space=vmem, size = 0x2000, scoped, tag = 'input window, operand 0']
    #allocation3 [shape = 's32[2]{0}', space=sflag, size = 0x8, scoped, tag = 'scoped memory for tpu_custom_call.1']
    #allocation4 [shape = 's32[2]{0}', space=sflag, size = 0x8, scoped, tag = 'scoped memory for tpu_custom_call.1']
    #allocation5 [shape = 'u8[32768]{0}', space=vmem, size = 0x8000, scoped, tag = 'input window, operand 1, single buffered']
    #allocation6 [shape = 's32[1]{0}', space=sflag, size = 0x4, scoped, tag = 'scoped memory for tpu_custom_call.1']
    #allocation7 [shape = 'u8[16384]{0}', space=vmem, size = 0x4000, scoped, tag = 'output window, operand 0']
    %11 = vsyncpa [#allocation3], 0
    %s12 = scalar_lea.sflag [#allocation3], 1
    %13 = vsyncpa %s12, 0
    %14 = vsyncpa [#allocation6], 0
    %15 = vsyncpa [#allocation4], 0
    %s16 = scalar_lea.sflag [#allocation4], 1
    %17 = vsyncpa %s16, 0
    loop: start=0, step=1, limit=6
    $region2: #{tpu_custom_call.1} parent=1 // loop_pre_header
      _
    $region3: #{tpu_custom_call.1} parent=1 // loop_header
      %s19 = sphi 0, %s23
      %p20 = scmp.ge.s32.totalorder %s19, 6
      %s29 = sphi 0, %s31
      %s32 = sphi 0, %s29
      %s33 = sphi 0, %s32
      %s49 = sphi 0, %s33
      %s53 = sphi 0, %s53
      %s55 = sphi 0, %s53
      %s56 = sphi 0, %s55
      %s70 = sphi 0, %s56
      %s74 = sphi 0, %s74
      %s76 = sphi 0, %s74
      %s77 = sphi 0, %s76
      %s91 = sphi 0, %s77
      %s95 = sphi 0, %s95
      %s97 = sphi 0, %s95
      %s98 = sphi 0, %s97
      %s112 = sphi 0, %s98
      %s116 = sphi 0, %s116
      %s118 = sphi 0, %s116
      %s119 = sphi 0, %s118
      %s133 = sphi 0, %s119
      %s137 = sphi 0, %s137
      %s139 = sphi 0, %s137
      %s140 = sphi 0, %s139
      %s154 = sphi 0, %s140
      %s160 = sphi 0, %s162
      %s163 = sphi 0, %s160
      %s164 = sphi 0, %s163
      %s180 = sphi 0, %s164
    $region4: #{tpu_custom_call.1} parent=1 // loop_header_branch
      %22 = sbr.rel (%p20) target = $region8
    $region5: #{tpu_custom_call.1} parent=1 // loop_body
      %s24 = ssub.s32 %s19, 1
      %s25 = ssub.s32 %s19, 2
      %s26 = sadd.s32 %s19, 1
      %s27 = ssub.s32 %s19, %s26
      %p28 = scmp.eq.s32.totalorder %s27, 0
      %s30 = sadd.s32 %s29, 1
      %s31 = scalar_select %p28, %s29, %s30
      %p34 = pneg %p28
      %p35 = scmp.eq.s32.totalorder %s19, 3
      %p36 = por %p34, %p35
      %p37 = scmp.ne.s32.totalorder %s29, %s32
      %p38 = scmp.eq.s32.totalorder %s19, 0
      %p39 = por %p37, %p38
      %p40 = scmp.ne.s32.totalorder %s29, %s32
      %p41 = scmp.eq.s32.totalorder %s24, 3
      %p42 = por %p40, %p41
      %p43 = scmp.ne.s32.totalorder %s32, %s33
      %p44 = scmp.eq.s32.totalorder %s24, 0
      %p45 = por %p43, %p44
      %p46 = scmp.ne.s32.totalorder %s32, %s33
      %p47 = scmp.eq.s32.totalorder %s25, 3
      %p48 = por %p46, %p47
      %p50 = scmp.ne.s32.totalorder %s33, %s49
      %p51 = scmp.eq.s32.totalorder %s25, 0
      %p52 = por %p50, %p51
      %s54 = sadd.s32 %s53, 1
      %p57 = scmp.eq.s32.totalorder %s19, 3
      %p58 = scmp.ne.s32.totalorder %s53, %s55
      %p59 = scmp.eq.s32.totalorder %s19, 0
      %p60 = por %p58, %p59
      %p61 = scmp.ne.s32.totalorder %s53, %s55
      %p62 = scmp.eq.s32.totalorder %s24, 3
      %p63 = por %p61, %p62
      %p64 = scmp.ne.s32.totalorder %s55, %s56
      %p65 = scmp.eq.s32.totalorder %s24, 0
      %p66 = por %p64, %p65
      %p67 = scmp.ne.s32.totalorder %s55, %s56
      %p68 = scmp.eq.s32.totalorder %s25, 3
      %p69 = por %p67, %p68
      %p71 = scmp.ne.s32.totalorder %s56, %s70
      %p72 = scmp.eq.s32.totalorder %s25, 0
      %p73 = por %p71, %p72
      %s75 = sadd.s32 %s74, 1
      %p78 = scmp.eq.s32.totalorder %s19, 3
      %p79 = scmp.ne.s32.totalorder %s74, %s76
      %p80 = scmp.eq.s32.totalorder %s19, 0
      %p81 = por %p79, %p80
      %p82 = scmp.ne.s32.totalorder %s74, %s76
      %p83 = scmp.eq.s32.totalorder %s24, 3
      %p84 = por %p82, %p83
      %p85 = scmp.ne.s32.totalorder %s76, %s77
      %p86 = scmp.eq.s32.totalorder %s24, 0
      %p87 = por %p85, %p86
      %p88 = scmp.ne.s32.totalorder %s76, %s77
      %p89 = scmp.eq.s32.totalorder %s25, 3
      %p90 = por %p88, %p89
      %p92 = scmp.ne.s32.totalorder %s77, %s91
      %p93 = scmp.eq.s32.totalorder %s25, 0
      %p94 = por %p92, %p93
      %s96 = sadd.s32 %s95, 1
      %p99 = scmp.eq.s32.totalorder %s19, 3
      %p100 = scmp.ne.s32.totalorder %s95, %s97
      %p101 = scmp.eq.s32.totalorder %s19, 0
      %p102 = por %p100, %p101
      %p103 = scmp.ne.s32.totalorder %s95, %s97
      %p104 = scmp.eq.s32.totalorder %s24, 3
      %p105 = por %p103, %p104
      %p106 = scmp.ne.s32.totalorder %s97, %s98
      %p107 = scmp.eq.s32.totalorder %s24, 0
      %p108 = por %p106, %p107
      %p109 = scmp.ne.s32.totalorder %s97, %s98
      %p110 = scmp.eq.s32.totalorder %s25, 3
      %p111 = por %p109, %p110
      %p113 = scmp.ne.s32.totalorder %s98, %s112
      %p114 = scmp.eq.s32.totalorder %s25, 0
      %p115 = por %p113, %p114
      %s117 = sadd.s32 %s116, 1
      %p120 = scmp.eq.s32.totalorder %s19, 3
      %p121 = scmp.ne.s32.totalorder %s116, %s118
      %p122 = scmp.eq.s32.totalorder %s19, 0
      %p123 = por %p121, %p122
      %p124 = scmp.ne.s32.totalorder %s116, %s118
      %p125 = scmp.eq.s32.totalorder %s24, 3
      %p126 = por %p124, %p125
      %p127 = scmp.ne.s32.totalorder %s118, %s119
      %p128 = scmp.eq.s32.totalorder %s24, 0
      %p129 = por %p127, %p128
      %p130 = scmp.ne.s32.totalorder %s118, %s119
      %p131 = scmp.eq.s32.totalorder %s25, 3
      %p132 = por %p130, %p131
      %p134 = scmp.ne.s32.totalorder %s119, %s133
      %p135 = scmp.eq.s32.totalorder %s25, 0
      %p136 = por %p134, %p135
      %s138 = sadd.s32 %s137, 1
      %p141 = scmp.eq.s32.totalorder %s19, 3
      %p142 = scmp.ne.s32.totalorder %s137, %s139
      %p143 = scmp.eq.s32.totalorder %s19, 0
      %p144 = por %p142, %p143
      %p145 = scmp.ne.s32.totalorder %s137, %s139
      %p146 = scmp.eq.s32.totalorder %s24, 3
      %p147 = por %p145, %p146
      %p148 = scmp.ne.s32.totalorder %s139, %s140
      %p149 = scmp.eq.s32.totalorder %s24, 0
      %p150 = por %p148, %p149
      %p151 = scmp.ne.s32.totalorder %s139, %s140
      %p152 = scmp.eq.s32.totalorder %s25, 3
      %p153 = por %p151, %p152
      %p155 = scmp.ne.s32.totalorder %s140, %s154
      %p156 = scmp.eq.s32.totalorder %s25, 0
      %p157 = por %p155, %p156
      %s158 = ssub.s32 %s19, %s26
      %p159 = scmp.eq.s32.totalorder %s158, 0
      %s161 = sadd.s32 %s160, 1
      %s162 = scalar_select %p159, %s160, %s161
      %p165 = pneg %p159
      %p166 = scmp.eq.s32.totalorder %s19, 3
      %p167 = por %p165, %p166
      %p168 = scmp.ne.s32.totalorder %s160, %s163
      %p169 = scmp.eq.s32.totalorder %s19, 0
      %p170 = por %p168, %p169
      %p171 = scmp.ne.s32.totalorder %s160, %s163
      %p172 = scmp.eq.s32.totalorder %s24, 3
      %p173 = por %p171, %p172
      %p174 = scmp.ne.s32.totalorder %s163, %s164
      %p175 = scmp.eq.s32.totalorder %s24, 0
      %p176 = por %p174, %p175
      %p177 = scmp.ne.s32.totalorder %s163, %s164
      %p178 = scmp.eq.s32.totalorder %s25, 3
      %p179 = por %p177, %p178
      %p181 = scmp.ne.s32.totalorder %s164, %s180
      %p182 = scmp.eq.s32.totalorder %s25, 0
      %p183 = por %p181, %p182
      %p184 = scmp.le.s32.totalorder 1, %s19
      %p185 = scmp.lt.s32.totalorder %s19, 5
      %p186 = pnand %p184, %p185
      %p187 = pneg %p186
      // Predicated region
      $region9: #{tpu_custom_call.1} parent=5 // pred_check
        _
      $region10: #{tpu_custom_call.1} parent=5 // pred_check_branch
        %189 = sbr.rel (%p186) target = $region12
      $region11: #{tpu_custom_call.1} parent=5 // pred_region
        %s190 = ssub.s32 %s19, 1
        // Predicated region
        $region13: #{tpu_custom_call.1} parent=11 // pred_check
          %p191 = pneg %p66
        $region14: #{tpu_custom_call.1} parent=11 // pred_check_branch
          %193 = sbr.rel (%p191) target = $region16
        $region15: #{tpu_custom_call.1} parent=11 // pred_region
          %s195 = ssub.s32 1024, 1024
          %196 = vsyncadd [#allocation6], %s195
          %s197 = sshll.u32 [#allocation5], 4
          %s198 = int_to_ptr.vmem [resolvable:$true] %s197
          %203 = dma.hbm_to_vmem [thread:$0]  %s1, 1024, %s198, [#allocation6], 256, 256, 16
        $region16: #{tpu_custom_call.1} parent=11 // pred_fallthru
          _
        // Predicated region
        $region17: #{tpu_custom_call.1} parent=11 // pred_check
          %p204 = pneg %p87
        $region18: #{tpu_custom_call.1} parent=11 // pred_check_branch
          %206 = sbr.rel (%p204) target = $region20
        $region19: #{tpu_custom_call.1} parent=11 // pred_region
          _
        $region20: #{tpu_custom_call.1} parent=11 // pred_fallthru
          _
        // Predicated region
        $region21: #{tpu_custom_call.1} parent=11 // pred_check
          %p207 = pneg %p108
        $region22: #{tpu_custom_call.1} parent=11 // pred_check_branch
          %209 = sbr.rel (%p207) target = $region24
        $region23: #{tpu_custom_call.1} parent=11 // pred_region
          _
        $region24: #{tpu_custom_call.1} parent=11 // pred_fallthru
          _
        // Predicated region
        $region25: #{tpu_custom_call.1} parent=11 // pred_check
          %p210 = pneg %p129
        $region26: #{tpu_custom_call.1} parent=11 // pred_check_branch
          %212 = sbr.rel (%p210) target = $region28
        $region27: #{tpu_custom_call.1} parent=11 // pred_region
          _
        $region28: #{tpu_custom_call.1} parent=11 // pred_fallthru
          _
        // Predicated region
        $region29: #{tpu_custom_call.1} parent=11 // pred_check
          %p213 = pneg %p150
        $region30: #{tpu_custom_call.1} parent=11 // pred_check_branch
          %215 = sbr.rel (%p213) target = $region32
        $region31: #{tpu_custom_call.1} parent=11 // pred_region
          _
        $region32: #{tpu_custom_call.1} parent=11 // pred_fallthru
          _
      $region12: #{tpu_custom_call.1} parent=5 // pred_fallthru
        _
      %p216 = scmp.lt.s32.totalorder %s19, 4
      // Predicated region
      $region33: #{tpu_custom_call.1} parent=5 // pred_check
        %p217 = pneg %p216
      $region34: #{tpu_custom_call.1} parent=5 // pred_check_branch
        %219 = sbr.rel (%p217) target = $region36
      $region35: #{tpu_custom_call.1} parent=5 // pred_region
        // Predicated region
        $region37: #{tpu_custom_call.1} parent=35 // pred_check
          %p220 = pneg %p39
        $region38: #{tpu_custom_call.1} parent=35 // pred_check_branch
          %222 = sbr.rel (%p220) target = $region40
        $region39: #{tpu_custom_call.1} parent=35 // pred_region
          %s223 = sand.u32 %s29, 1
          %s224 = scalar_lea.sflag [#allocation3], %s223
          %s225 = sand.u32 %s29, 1
          %s226 = smul.addr %s225, 8
          %s227 = scalar_lea.vmem [#allocation2], %s226
          %s229 = ssub.s32 128, 128
          %230 = vsyncadd %s224, %s229
          %s231 = smul.addr %s19, 2
          %s232 = smul.addr %s231, 64
          %s233 = scalar_lea.hbm %s0, %s232
          %s235 = sshll.u32 %s227, 4
          %s236 = int_to_ptr.vmem [resolvable:$true] %s235
          %238 = dma.hbm_to_vmem [thread:$0]  %s233, 128, %s236, %s224
        $region40: #{tpu_custom_call.1} parent=35 // pred_fallthru
          _
      $region36: #{tpu_custom_call.1} parent=5 // pred_fallthru
        _
      %p239 = scmp.le.s32.totalorder 1, %s19
      %p240 = scmp.lt.s32.totalorder %s19, 5
      %p241 = pnand %p239, %p240
      %p242 = pneg %p241
      // Predicated region
      $region41: #{tpu_custom_call.1} parent=5 // pred_check
        _
      $region42: #{tpu_custom_call.1} parent=5 // pred_check_branch
        %244 = sbr.rel (%p241) target = $region44
      $region43: #{tpu_custom_call.1} parent=5 // pred_region
        %s245 = ssub.s32 %s19, 1
        %s246 = sand.u32 %s32, 1
        %s247 = scalar_lea.sflag [#allocation3], %s246
        %s248 = sand.u32 %s32, 1
        %s249 = smul.addr %s248, 8
        %s250 = scalar_lea.vmem [#allocation2], %s249
        // Predicated region
        $region45: #{tpu_custom_call.1} parent=43 // pred_check
          %p251 = pneg %p45
        $region46: #{tpu_custom_call.1} parent=43 // pred_check_branch
          %253 = sbr.rel (%p251) target = $region48
        $region47: #{tpu_custom_call.1} parent=43 // pred_region
          %254 = dma.done %s247, 128
        $region48: #{tpu_custom_call.1} parent=43 // pred_fallthru
          _
        // Predicated region
        $region49: #{tpu_custom_call.1} parent=43 // pred_check
          %p255 = pneg %p66
        $region50: #{tpu_custom_call.1} parent=43 // pred_check_branch
          %257 = sbr.rel (%p255) target = $region52
        $region51: #{tpu_custom_call.1} parent=43 // pred_region
          %258 = dma.done [#allocation6], 1024
        $region52: #{tpu_custom_call.1} parent=43 // pred_fallthru
          _
        %s259 = sand.u32 %s32, 1
        %s260 = scalar_lea.sflag [#allocation3], %s259
        %s261 = sand.u32 %s32, 1
        %s262 = smul.addr %s261, 8
        %s263 = scalar_lea.vmem [#allocation2], %s262
        %p264 = pneg %p45
        %p265 = pneg %p42
        %p266 = pneg %p66
        %p267 = pneg %p63
        %p268 = pneg %p87
        %p269 = pneg %p84
        %p270 = pneg %p108
        %p271 = pneg %p105
        %p272 = pneg %p129
        %p273 = pneg %p126
        %p274 = pneg %p150
        %p275 = pneg %p147
        %p276 = pneg %p176
        %p277 = pneg %p173
        %s278 = sand.u32 %s163, 1
        %s279 = scalar_lea.sflag [#allocation4], %s278
        %s280 = sand.u32 %s163, 1
        %s281 = smul.addr %s280, 16
        %s282 = scalar_lea.vmem [#allocation7], %s281
        %v283 = vld [vmem:[%s2] sm:$0xf]
        %v284 = vld [vmem:[%s3] sm:$0xf]
        %v285 = vld [vmem:[%s4] sm:$0xff]
        %v286 = vld [vmem:[%s5] sm:$0xff]
        %v287 = vld [vmem:[%s250] sm:$0xff]
        %v288 = vmax.f32 %v287, 0.0
        %290 = vset.pattern.permute.xlu0 0
        %291 = vperm.xlu0 %290, %v284
        %v292 = vpop.permute.xlu0 %291
        %v294 = vunpack.c.l.s4 839922192
        %v295 = vunpack.c.0.s8 %v294
        %v296 = vlaneseq
        %v297 = vshrl.u32 %v296, 7
        %v298 = vsub.s32 %v295, %v297
        %v299 = vrot.slane %v292, %v298
        %v301 = vadd.f32 %v287, %v299
        %v302 = vld [vmem:[#allocation5] ss:$8 sm:$0x3]
        %v304 = vcombine.high %v288, %v288
        %306 = vrot.lane.b32.xlu0 %v288, 34
        %v307 = vpop.permute.xlu0 %306
        %308 = vrot.lane.b32.xlu0 %v304, 34
        %v309 = vpop.permute.xlu0 %308
        %v310 = vlaneseq
        %v311 = vand.u32 %v310, 127
        %vm312 = vcmp.lt.s32.totalorder %v311, 34
        %v313 = vsel %vm312, %v307, %v309
        %v314 = vsel %vm312, %v309, %v307
        %v316 = vlaneseq
        %v317 = vshrl.u32 %v316, 7
        %v318 = vsub.s32 0, %v317
        %v319 = vrot.slane %v302, %v318
        %v320 = vlaneseq
        %v321 = vshrl.u32 %v320, 7
        %v322 = vsub.s32 1, %v321
        %v323 = vrot.slane %v302, %v322
        %v326 = vmul.f32 %v319, %v314
        %v327 = vmul.f32 %v323, %v313
        %329 = vset.pattern.permute.xlu0 0
        %330 = vperm.xlu0 %329, %v283
        %v331 = vpop.permute.xlu0 %330
        %v333 = vmul.f32 %v331, %v326
        %v334 = vmul.f32 %v331, %v327
        %v337 = vcombine.low %v333, %v334
        %v339 = vadd.f32 %v301, %v337
        %s340 = scalar_lea.vmem [#allocation5], 1
        %v341 = vld [vmem:[%s340] ss:$8 sm:$0x3]
        %342 = vrot.lane.b32.xlu0 %v288, 33
        %v343 = vpop.permute.xlu0 %342
        %344 = vrot.lane.b32.xlu0 %v304, 33
        %v345 = vpop.permute.xlu0 %344
        %vm346 = vcmp.lt.s32.totalorder %v311, 33
        %v347 = vsel %vm346, %v343, %v345
        %v348 = vsel %vm346, %v345, %v343
        %v350 = vlaneseq
        %v351 = vshrl.u32 %v350, 7
        %v352 = vsub.s32 0, %v351
        %v353 = vrot.slane %v341, %v352
        %v354 = vlaneseq
        %v355 = vshrl.u32 %v354, 7
        %v356 = vsub.s32 1, %v355
        %v357 = vrot.slane %v341, %v356
        %v360 = vmul.f32 %v353, %v348
        %v361 = vmul.f32 %v357, %v347
        %362 = vset.pattern.permute.xlu0 1
        %363 = vperm.xlu0 %362, %v283
        %v364 = vpop.permute.xlu0 %363
        %v366 = vmul.f32 %v364, %v360
        %v367 = vmul.f32 %v364, %v361
        %v370 = vcombine.low %v366, %v367
        %v372 = vadd.f32 %v339, %v370
        %s373 = scalar_lea.vmem [#allocation5], 2
        %v374 = vld [vmem:[%s373] ss:$8 sm:$0x3]
        %375 = vrot.lane.b32.xlu0 %v288, 32
        %v376 = vpop.permute.xlu0 %375
        %377 = vrot.lane.b32.xlu0 %v304, 32
        %v378 = vpop.permute.xlu0 %377
        %vm379 = vcmp.lt.s32.totalorder %v311, 32
        %v380 = vsel %vm379, %v376, %v378
        %v381 = vsel %vm379, %v378, %v376
        %v383 = vlaneseq
        %v384 = vshrl.u32 %v383, 7
        %v385 = vsub.s32 0, %v384
        %v386 = vrot.slane %v374, %v385
        %v387 = vlaneseq
        %v388 = vshrl.u32 %v387, 7
        %v389 = vsub.s32 1, %v388
        %v390 = vrot.slane %v374, %v389
        %v393 = vmul.f32 %v386, %v381
        %v394 = vmul.f32 %v390, %v380
        %395 = vset.pattern.permute.xlu0 2
        %396 = vperm.xlu0 %395, %v283
        %v397 = vpop.permute.xlu0 %396
        %v399 = vmul.f32 %v397, %v393
        %v400 = vmul.f32 %v397, %v394
        %v403 = vcombine.low %v399, %v400
        %v405 = vadd.f32 %v372, %v403
        %s406 = scalar_lea.vmem [#allocation5], 3
        %v407 = vld [vmem:[%s406] ss:$8 sm:$0x3]
        %408 = vrot.lane.b32.xlu0 %v288, 31
        %v409 = vpop.permute.xlu0 %408
        %410 = vrot.lane.b32.xlu0 %v304, 31
        %v411 = vpop.permute.xlu0 %410
        %vm412 = vcmp.lt.s32.totalorder %v311, 31
        %v413 = vsel %vm412, %v409, %v411
        %v414 = vsel %vm412, %v411, %v409
        %v416 = vlaneseq
        %v417 = vshrl.u32 %v416, 7
        %v418 = vsub.s32 0, %v417
        %v419 = vrot.slane %v407, %v418
        %v420 = vlaneseq
        %v421 = vshrl.u32 %v420, 7
        %v422 = vsub.s32 1, %v421
        %v423 = vrot.slane %v407, %v422
        %v426 = vmul.f32 %v419, %v414
        %v427 = vmul.f32 %v423, %v413
        %428 = vset.pattern.permute.xlu0 3
        %429 = vperm.xlu0 %428, %v283
        %v430 = vpop.permute.xlu0 %429
        %v432 = vmul.f32 %v430, %v426
        %v433 = vmul.f32 %v430, %v427
        %v436 = vcombine.low %v432, %v433
        %v438 = vadd.f32 %v405, %v436
        %s439 = scalar_lea.vmem [#allocation5], 4
        %v440 = vld [vmem:[%s439] ss:$8 sm:$0x3]
        %441 = vrot.lane.b32.xlu0 %v288, 30
        %v442 = vpop.permute.xlu0 %441
        %443 = vrot.lane.b32.xlu0 %v304, 30
        %v444 = vpop.permute.xlu0 %443
        %vm445 = vcmp.lt.s32.totalorder %v311, 30
        %v446 = vsel %vm445, %v442, %v444
        %v447 = vsel %vm445, %v444, %v442
        %v449 = vlaneseq
        %v450 = vshrl.u32 %v449, 7
        %v451 = vsub.s32 0, %v450
        %v452 = vrot.slane %v440, %v451
        %v453 = vlaneseq
        %v454 = vshrl.u32 %v453, 7
        %v455 = vsub.s32 1, %v454
        %v456 = vrot.slane %v440, %v455
        %v459 = vmul.f32 %v452, %v447
        %v460 = vmul.f32 %v456, %v446
        %461 = vset.pattern.permute.xlu0 4
        %462 = vperm.xlu0 %461, %v283
        %v463 = vpop.permute.xlu0 %462
        %v465 = vmul.f32 %v463, %v459
        %v466 = vmul.f32 %v463, %v460
        %v469 = vcombine.low %v465, %v466
        %v471 = vadd.f32 %v438, %v469
        %s472 = scalar_lea.vmem [#allocation5], 5
        %v473 = vld [vmem:[%s472] ss:$8 sm:$0x3]
        %474 = vrot.lane.b32.xlu0 %v288, 18
        %v475 = vpop.permute.xlu0 %474
        %476 = vrot.lane.b32.xlu0 %v304, 18
        %v477 = vpop.permute.xlu0 %476
        %vm478 = vcmp.lt.s32.totalorder %v311, 18
        %v479 = vsel %vm478, %v475, %v477
        %v480 = vsel %vm478, %v477, %v475
        %v482 = vlaneseq
        %v483 = vshrl.u32 %v482, 7
        %v484 = vsub.s32 0, %v483
        %v485 = vrot.slane %v473, %v484
        %v486 = vlaneseq
        %v487 = vshrl.u32 %v486, 7
        %v488 = vsub.s32 1, %v487
        %v489 = vrot.slane %v473, %v488
        %v492 = vmul.f32 %v485, %v480
        %v493 = vmul.f32 %v489, %v479
        %494 = vset.pattern.permute.xlu0 5
        %495 = vperm.xlu0 %494, %v283
        %v496 = vpop.permute.xlu0 %495
        %v498 = vmul.f32 %v496, %v492
        %v499 = vmul.f32 %v496, %v493
        %v502 = vcombine.low %v498, %v499
        %v504 = vadd.f32 %v471, %v502
        %s505 = scalar_lea.vmem [#allocation5], 6
        %v506 = vld [vmem:[%s505] ss:$8 sm:$0x3]
        %507 = vrot.lane.b32.xlu0 %v288, 17
        %v508 = vpop.permute.xlu0 %507
        %509 = vrot.lane.b32.xlu0 %v304, 17
        %v510 = vpop.permute.xlu0 %509
        %vm511 = vcmp.lt.s32.totalorder %v311, 17
        %v512 = vsel %vm511, %v508, %v510
        %v513 = vsel %vm511, %v510, %v508
        %v515 = vlaneseq
        %v516 = vshrl.u32 %v515, 7
        %v517 = vsub.s32 0, %v516
        %v518 = vrot.slane %v506, %v517
        %v519 = vlaneseq
        %v520 = vshrl.u32 %v519, 7
        %v521 = vsub.s32 1, %v520
        %v522 = vrot.slane %v506, %v521
        %v525 = vmul.f32 %v518, %v513
        %v526 = vmul.f32 %v522, %v512
        %527 = vset.pattern.permute.xlu0 6
        %528 = vperm.xlu0 %527, %v283
        %v529 = vpop.permute.xlu0 %528
        %v531 = vmul.f32 %v529, %v525
        %v532 = vmul.f32 %v529, %v526
        %v535 = vcombine.low %v531, %v532
        %v537 = vadd.f32 %v504, %v535
        %s538 = scalar_lea.vmem [#allocation5], 7
        %v539 = vld [vmem:[%s538] ss:$8 sm:$0x3]
        %540 = vrot.lane.b32.xlu0 %v288, 16
        %v541 = vpop.permute.xlu0 %540
        %542 = vrot.lane.b32.xlu0 %v304, 16
        %v543 = vpop.permute.xlu0 %542
        %vm544 = vcmp.lt.s32.totalorder %v311, 16
        %v545 = vsel %vm544, %v541, %v543
        %v546 = vsel %vm544, %v543, %v541
        %v548 = vlaneseq
        %v549 = vshrl.u32 %v548, 7
        %v550 = vsub.s32 0, %v549
        %v551 = vrot.slane %v539, %v550
        %v552 = vlaneseq
        %v553 = vshrl.u32 %v552, 7
        %v554 = vsub.s32 1, %v553
        %v555 = vrot.slane %v539, %v554
        %v558 = vmul.f32 %v551, %v546
        %v559 = vmul.f32 %v555, %v545
        %560 = vset.pattern.permute.xlu0 7
        %561 = vperm.xlu0 %560, %v283
        %v562 = vpop.permute.xlu0 %561
        %v564 = vmul.f32 %v562, %v558
        %v565 = vmul.f32 %v562, %v559
        %v568 = vcombine.low %v564, %v565
        %v570 = vadd.f32 %v537, %v568
        %s571 = scalar_lea.vmem [#allocation5], 16
        %v572 = vld [vmem:[%s571] ss:$8 sm:$0x3]
        %573 = vrot.lane.b32.xlu0 %v288, 15
        %v574 = vpop.permute.xlu0 %573
        %575 = vrot.lane.b32.xlu0 %v304, 15
        %v576 = vpop.permute.xlu0 %575
        %vm577 = vcmp.lt.s32.totalorder %v311, 15
        %v578 = vsel %vm577, %v574, %v576
        %v579 = vsel %vm577, %v576, %v574
        %v581 = vlaneseq
        %v582 = vshrl.u32 %v581, 7
        %v583 = vsub.s32 0, %v582
        %v584 = vrot.slane %v572, %v583
        %v585 = vlaneseq
        %v586 = vshrl.u32 %v585, 7
        %v587 = vsub.s32 1, %v586
        %v588 = vrot.slane %v572, %v587
        %v591 = vmul.f32 %v584, %v579
        %v592 = vmul.f32 %v588, %v578
        %593 = vset.pattern.permute.xlu0 8
        %594 = vperm.xlu0 %593, %v283
        %v595 = vpop.permute.xlu0 %594
        %v597 = vmul.f32 %v595, %v591
        %v598 = vmul.f32 %v595, %v592
        %v601 = vcombine.low %v597, %v598
        %v603 = vadd.f32 %v570, %v601
        %s604 = scalar_lea.vmem [#allocation5], 17
        %v605 = vld [vmem:[%s604] ss:$8 sm:$0x3]
        %606 = vrot.lane.b32.xlu0 %v288, 14
        %v607 = vpop.permute.xlu0 %606
        %608 = vrot.lane.b32.xlu0 %v304, 14
        %v609 = vpop.permute.xlu0 %608
        %vm610 = vcmp.lt.s32.totalorder %v311, 14
        %v611 = vsel %vm610, %v607, %v609
        %v612 = vsel %vm610, %v609, %v607
        %v614 = vlaneseq
        %v615 = vshrl.u32 %v614, 7
        %v616 = vsub.s32 0, %v615
        %v617 = vrot.slane %v605, %v616
        %v618 = vlaneseq
        %v619 = vshrl.u32 %v618, 7
        %v620 = vsub.s32 1, %v619
        %v621 = vrot.slane %v605, %v620
        %v624 = vmul.f32 %v617, %v612
        %v625 = vmul.f32 %v621, %v611
        %626 = vset.pattern.permute.xlu0 9
        %627 = vperm.xlu0 %626, %v283
        %v628 = vpop.permute.xlu0 %627
        %v630 = vmul.f32 %v628, %v624
        %v631 = vmul.f32 %v628, %v625
        %v634 = vcombine.low %v630, %v631
        %v636 = vadd.f32 %v603, %v634
        %s637 = scalar_lea.vmem [#allocation5], 18
        %v638 = vld [vmem:[%s637] ss:$8 sm:$0x3]
        %639 = vrot.lane.b32.xlu0 %v288, 2
        %v640 = vpop.permute.xlu0 %639
        %641 = vrot.lane.b32.xlu0 %v304, 2
        %v642 = vpop.permute.xlu0 %641
        %vm643 = vcmp.lt.s32.totalorder %v311, 2
        %v644 = vsel %vm643, %v640, %v642
        %v645 = vsel %vm643, %v642, %v640
        %v647 = vlaneseq
        %v648 = vshrl.u32 %v647, 7
        %v649 = vsub.s32 0, %v648
        %v650 = vrot.slane %v638, %v649
        %v651 = vlaneseq
        %v652 = vshrl.u32 %v651, 7
        %v653 = vsub.s32 1, %v652
        %v654 = vrot.slane %v638, %v653
        %v657 = vmul.f32 %v650, %v645
        %v658 = vmul.f32 %v654, %v644
        %659 = vset.pattern.permute.xlu0 10
        %660 = vperm.xlu0 %659, %v283
        %v661 = vpop.permute.xlu0 %660
        %v663 = vmul.f32 %v661, %v657
        %v664 = vmul.f32 %v661, %v658
        %v667 = vcombine.low %v663, %v664
        %v669 = vadd.f32 %v636, %v667
        %s670 = scalar_lea.vmem [#allocation5], 19
        %v671 = vld [vmem:[%s670] ss:$8 sm:$0x3]
        %672 = vrot.lane.b32.xlu0 %v288, 1
        %v673 = vpop.permute.xlu0 %672
        %674 = vrot.lane.b32.xlu0 %v304, 1
        %v675 = vpop.permute.xlu0 %674
        %vm676 = vcmp.lt.s32.totalorder %v311, 1
        %v677 = vsel %vm676, %v673, %v675
        %v678 = vsel %vm676, %v675, %v673
        %v680 = vlaneseq
        %v681 = vshrl.u32 %v680, 7
        %v682 = vsub.s32 0, %v681
        %v683 = vrot.slane %v671, %v682
        %v684 = vlaneseq
        %v685 = vshrl.u32 %v684, 7
        %v686 = vsub.s32 1, %v685
        %v687 = vrot.slane %v671, %v686
        %v690 = vmul.f32 %v683, %v678
        %v691 = vmul.f32 %v687, %v677
        %692 = vset.pattern.permute.xlu0 11
        %693 = vperm.xlu0 %692, %v283
        %v694 = vpop.permute.xlu0 %693
        %v696 = vmul.f32 %v694, %v690
        %v697 = vmul.f32 %v694, %v691
        %v700 = vcombine.low %v696, %v697
        %v702 = vadd.f32 %v669, %v700
        %s703 = scalar_lea.vmem [#allocation5], 20
        %v704 = vld [vmem:[%s703] ss:$8 sm:$0x3]
        %v706 = vlaneseq
        %v707 = vshrl.u32 %v706, 7
        %v708 = vsub.s32 0, %v707
        %v709 = vrot.slane %v704, %v708
        %v710 = vlaneseq
        %v711 = vshrl.u32 %v710, 7
        %v712 = vsub.s32 1, %v711
        %v713 = vrot.slane %v704, %v712
        %v716 = vmul.f32 %v709, %v288
        %v717 = vmul.f32 %v713, %v304
        %718 = vset.pattern.permute.xlu0 12
        %719 = vperm.xlu0 %718, %v283
        %v720 = vpop.permute.xlu0 %719
        %v722 = vmul.f32 %v720, %v716
        %v723 = vmul.f32 %v720, %v717
        %v726 = vcombine.low %v722, %v723
        %v728 = vadd.f32 %v702, %v726
        %s729 = scalar_lea.vmem [#allocation5], 21
        %v730 = vld [vmem:[%s729] ss:$8 sm:$0x3]
        %731 = vrot.lane.b32.xlu0 %v288, 127
        %v732 = vpop.permute.xlu0 %731
        %733 = vrot.lane.b32.xlu0 %v304, 127
        %v734 = vpop.permute.xlu0 %733
        %vm735 = vcmp.lt.s32.totalorder %v311, 127
        %v736 = vsel %vm735, %v732, %v734
        %v737 = vsel %vm735, %v734, %v732
        %v739 = vlaneseq
        %v740 = vshrl.u32 %v739, 7
        %v741 = vsub.s32 0, %v740
        %v742 = vrot.slane %v730, %v741
        %v743 = vlaneseq
        %v744 = vshrl.u32 %v743, 7
        %v745 = vsub.s32 1, %v744
        %v746 = vrot.slane %v730, %v745
        %v749 = vmul.f32 %v742, %v736
        %v750 = vmul.f32 %v746, %v737
        %751 = vset.pattern.permute.xlu0 13
        %752 = vperm.xlu0 %751, %v283
        %v753 = vpop.permute.xlu0 %752
        %v755 = vmul.f32 %v753, %v749
        %v756 = vmul.f32 %v753, %v750
        %v759 = vcombine.low %v755, %v756
        %v761 = vadd.f32 %v728, %v759
        %s762 = scalar_lea.vmem [#allocation5], 22
        %v763 = vld [vmem:[%s762] ss:$8 sm:$0x3]
        %764 = vrot.lane.b32.xlu0 %v288, 126
        %v765 = vpop.permute.xlu0 %764
        %766 = vrot.lane.b32.xlu0 %v304, 126
        %v767 = vpop.permute.xlu0 %766
        %vm768 = vcmp.lt.s32.totalorder %v311, 126
        %v769 = vsel %vm768, %v765, %v767
        %v770 = vsel %vm768, %v767, %v765
        %v772 = vlaneseq
        %v773 = vshrl.u32 %v772, 7
        %v774 = vsub.s32 0, %v773
        %v775 = vrot.slane %v763, %v774
        %v776 = vlaneseq
        %v777 = vshrl.u32 %v776, 7
        %v778 = vsub.s32 1, %v777
        %v779 = vrot.slane %v763, %v778
        %v782 = vmul.f32 %v775, %v769
        %v783 = vmul.f32 %v779, %v770
        %784 = vset.pattern.permute.xlu0 14
        %785 = vperm.xlu0 %784, %v283
        %v786 = vpop.permute.xlu0 %785
        %v788 = vmul.f32 %v786, %v782
        %v789 = vmul.f32 %v786, %v783
        %v792 = vcombine.low %v788, %v789
        %v794 = vadd.f32 %v761, %v792
        %s795 = scalar_lea.vmem [#allocation5], 23
        %v796 = vld [vmem:[%s795] ss:$8 sm:$0x3]
        %797 = vrot.lane.b32.xlu0 %v288, 114
        %v798 = vpop.permute.xlu0 %797
        %799 = vrot.lane.b32.xlu0 %v304, 114
        %v800 = vpop.permute.xlu0 %799
        %vm801 = vcmp.lt.s32.totalorder %v311, 114
        %v802 = vsel %vm801, %v798, %v800
        %v803 = vsel %vm801, %v800, %v798
        %v805 = vlaneseq
        %v806 = vshrl.u32 %v805, 7
        %v807 = vsub.s32 0, %v806
        %v808 = vrot.slane %v796, %v807
        %v809 = vlaneseq
        %v810 = vshrl.u32 %v809, 7
        %v811 = vsub.s32 1, %v810
        %v812 = vrot.slane %v796, %v811
        %v815 = vmul.f32 %v808, %v802
        %v816 = vmul.f32 %v812, %v803
        %817 = vset.pattern.permute.xlu0 15
        %818 = vperm.xlu0 %817, %v283
        %v819 = vpop.permute.xlu0 %818
        %v821 = vmul.f32 %v819, %v815
        %v822 = vmul.f32 %v819, %v816
        %v825 = vcombine.low %v821, %v822
        %v827 = vadd.f32 %v794, %v825
        %s828 = scalar_lea.vmem [#allocation5], 32
        %v829 = vld [vmem:[%s828] ss:$8 sm:$0x3]
        %830 = vrot.lane.b32.xlu0 %v288, 113
        %v831 = vpop.permute.xlu0 %830
        %832 = vrot.lane.b32.xlu0 %v304, 113
        %v833 = vpop.permute.xlu0 %832
        %vm834 = vcmp.lt.s32.totalorder %v311, 113
        %v835 = vsel %vm834, %v831, %v833
        %v836 = vsel %vm834, %v833, %v831
        %v838 = vlaneseq
        %v839 = vshrl.u32 %v838, 7
        %v840 = vsub.s32 0, %v839
        %v841 = vrot.slane %v829, %v840
        %v842 = vlaneseq
        %v843 = vshrl.u32 %v842, 7
        %v844 = vsub.s32 1, %v843
        %v845 = vrot.slane %v829, %v844
        %v848 = vmul.f32 %v841, %v835
        %v849 = vmul.f32 %v845, %v836
        %850 = vset.pattern.permute.xlu0 16
        %851 = vperm.xlu0 %850, %v283
        %v852 = vpop.permute.xlu0 %851
        %v854 = vmul.f32 %v852, %v848
        %v855 = vmul.f32 %v852, %v849
        %v858 = vcombine.low %v854, %v855
        %v860 = vadd.f32 %v827, %v858
        %s861 = scalar_lea.vmem [#allocation5], 33
        %v862 = vld [vmem:[%s861] ss:$8 sm:$0x3]
        %863 = vrot.lane.b32.xlu0 %v288, 112
        %v864 = vpop.permute.xlu0 %863
        %865 = vrot.lane.b32.xlu0 %v304, 112
        %v866 = vpop.permute.xlu0 %865
        %vm867 = vcmp.lt.s32.totalorder %v311, 112
        %v868 = vsel %vm867, %v864, %v866
        %v869 = vsel %vm867, %v866, %v864
        %v871 = vlaneseq
        %v872 = vshrl.u32 %v871, 7
        %v873 = vsub.s32 0, %v872
        %v874 = vrot.slane %v862, %v873
        %v875 = vlaneseq
        %v876 = vshrl.u32 %v875, 7
        %v877 = vsub.s32 1, %v876
        %v878 = vrot.slane %v862, %v877
        %v881 = vmul.f32 %v874, %v868
        %v882 = vmul.f32 %v878, %v869
        %883 = vset.pattern.permute.xlu0 17
        %884 = vperm.xlu0 %883, %v283
        %v885 = vpop.permute.xlu0 %884
        %v887 = vmul.f32 %v885, %v881
        %v888 = vmul.f32 %v885, %v882
        %v891 = vcombine.low %v887, %v888
        %v893 = vadd.f32 %v860, %v891
        %s894 = scalar_lea.vmem [#allocation5], 34
        %v895 = vld [vmem:[%s894] ss:$8 sm:$0x3]
        %896 = vrot.lane.b32.xlu0 %v288, 111
        %v897 = vpop.permute.xlu0 %896
        %898 = vrot.lane.b32.xlu0 %v304, 111
        %v899 = vpop.permute.xlu0 %898
        %vm900 = vcmp.lt.s32.totalorder %v311, 111
        %v901 = vsel %vm900, %v897, %v899
        %v902 = vsel %vm900, %v899, %v897
        %v904 = vlaneseq
        %v905 = vshrl.u32 %v904, 7
        %v906 = vsub.s32 0, %v905
        %v907 = vrot.slane %v895, %v906
        %v908 = vlaneseq
        %v909 = vshrl.u32 %v908, 7
        %v910 = vsub.s32 1, %v909
        %v911 = vrot.slane %v895, %v910
        %v914 = vmul.f32 %v907, %v901
        %v915 = vmul.f32 %v911, %v902
        %916 = vset.pattern.permute.xlu0 18
        %917 = vperm.xlu0 %916, %v283
        %v918 = vpop.permute.xlu0 %917
        %v920 = vmul.f32 %v918, %v914
        %v921 = vmul.f32 %v918, %v915
        %v924 = vcombine.low %v920, %v921
        %v926 = vadd.f32 %v893, %v924
        %s927 = scalar_lea.vmem [#allocation5], 35
        %v928 = vld [vmem:[%s927] ss:$8 sm:$0x3]
        %929 = vrot.lane.b32.xlu0 %v288, 110
        %v930 = vpop.permute.xlu0 %929
        %931 = vrot.lane.b32.xlu0 %v304, 110
        %v932 = vpop.permute.xlu0 %931
        %vm933 = vcmp.lt.s32.totalorder %v311, 110
        %v934 = vsel %vm933, %v930, %v932
        %v935 = vsel %vm933, %v932, %v930
        %v937 = vlaneseq
        %v938 = vshrl.u32 %v937, 7
        %v939 = vsub.s32 0, %v938
        %v940 = vrot.slane %v928, %v939
        %v941 = vlaneseq
        %v942 = vshrl.u32 %v941, 7
        %v943 = vsub.s32 1, %v942
        %v944 = vrot.slane %v928, %v943
        %v947 = vmul.f32 %v940, %v934
        %v948 = vmul.f32 %v944, %v935
        %949 = vset.pattern.permute.xlu0 19
        %950 = vperm.xlu0 %949, %v283
        %v951 = vpop.permute.xlu0 %950
        %v953 = vmul.f32 %v951, %v947
        %v954 = vmul.f32 %v951, %v948
        %v957 = vcombine.low %v953, %v954
        %v959 = vadd.f32 %v926, %v957
        %s960 = scalar_lea.vmem [#allocation5], 36
        %v961 = vld [vmem:[%s960] ss:$8 sm:$0x3]
        %962 = vrot.lane.b32.xlu0 %v288, 98
        %v963 = vpop.permute.xlu0 %962
        %964 = vrot.lane.b32.xlu0 %v304, 98
        %v965 = vpop.permute.xlu0 %964
        %vm966 = vcmp.lt.s32.totalorder %v311, 98
        %v967 = vsel %vm966, %v963, %v965
        %v968 = vsel %vm966, %v965, %v963
        %v970 = vlaneseq
        %v971 = vshrl.u32 %v970, 7
        %v972 = vsub.s32 0, %v971
        %v973 = vrot.slane %v961, %v972
        %v974 = vlaneseq
        %v975 = vshrl.u32 %v974, 7
        %v976 = vsub.s32 1, %v975
        %v977 = vrot.slane %v961, %v976
        %v980 = vmul.f32 %v973, %v967
        %v981 = vmul.f32 %v977, %v968
        %982 = vset.pattern.permute.xlu0 20
        %983 = vperm.xlu0 %982, %v283
        %v984 = vpop.permute.xlu0 %983
        %v986 = vmul.f32 %v984, %v980
        %v987 = vmul.f32 %v984, %v981
        %v990 = vcombine.low %v986, %v987
        %v992 = vadd.f32 %v959, %v990
        %s993 = scalar_lea.vmem [#allocation5], 37
        %v994 = vld [vmem:[%s993] ss:$8 sm:$0x3]
        %995 = vrot.lane.b32.xlu0 %v288, 97
        %v996 = vpop.permute.xlu0 %995
        %997 = vrot.lane.b32.xlu0 %v304, 97
        %v998 = vpop.permute.xlu0 %997
        %vm999 = vcmp.lt.s32.totalorder %v311, 97
        %v1000 = vsel %vm999, %v996, %v998
        %v1001 = vsel %vm999, %v998, %v996
        %v1003 = vlaneseq
        %v1004 = vshrl.u32 %v1003, 7
        %v1005 = vsub.s32 0, %v1004
        %v1006 = vrot.slane %v994, %v1005
        %v1007 = vlaneseq
        %v1008 = vshrl.u32 %v1007, 7
        %v1009 = vsub.s32 1, %v1008
        %v1010 = vrot.slane %v994, %v1009
        %v1013 = vmul.f32 %v1006, %v1000
        %v1014 = vmul.f32 %v1010, %v1001
        %1015 = vset.pattern.permute.xlu0 21
        %1016 = vperm.xlu0 %1015, %v283
        %v1017 = vpop.permute.xlu0 %1016
        %v1019 = vmul.f32 %v1017, %v1013
        %v1020 = vmul.f32 %v1017, %v1014
        %v1023 = vcombine.low %v1019, %v1020
        %v1025 = vadd.f32 %v992, %v1023
        %s1026 = scalar_lea.vmem [#allocation5], 38
        %v1027 = vld [vmem:[%s1026] ss:$8 sm:$0x3]
        %1028 = vrot.lane.b32.xlu0 %v288, 96
        %v1029 = vpop.permute.xlu0 %1028
        %1030 = vrot.lane.b32.xlu0 %v304, 96
        %v1031 = vpop.permute.xlu0 %1030
        %vm1032 = vcmp.lt.s32.totalorder %v311, 96
        %v1033 = vsel %vm1032, %v1029, %v1031
        %v1034 = vsel %vm1032, %v1031, %v1029
        %v1036 = vlaneseq
        %v1037 = vshrl.u32 %v1036, 7
        %v1038 = vsub.s32 0, %v1037
        %v1039 = vrot.slane %v1027, %v1038
        %v1040 = vlaneseq
        %v1041 = vshrl.u32 %v1040, 7
        %v1042 = vsub.s32 1, %v1041
        %v1043 = vrot.slane %v1027, %v1042
        %v1046 = vmul.f32 %v1039, %v1033
        %v1047 = vmul.f32 %v1043, %v1034
        %1048 = vset.pattern.permute.xlu0 22
        %1049 = vperm.xlu0 %1048, %v283
        %v1050 = vpop.permute.xlu0 %1049
        %v1052 = vmul.f32 %v1050, %v1046
        %v1053 = vmul.f32 %v1050, %v1047
        %v1056 = vcombine.low %v1052, %v1053
        %v1058 = vadd.f32 %v1025, %v1056
        %s1059 = scalar_lea.vmem [#allocation5], 39
        %v1060 = vld [vmem:[%s1059] ss:$8 sm:$0x3]
        %1061 = vrot.lane.b32.xlu0 %v288, 95
        %v1062 = vpop.permute.xlu0 %1061
        %1063 = vrot.lane.b32.xlu0 %v304, 95
        %v1064 = vpop.permute.xlu0 %1063
        %vm1065 = vcmp.lt.s32.totalorder %v311, 95
        %v1066 = vsel %vm1065, %v1062, %v1064
        %v1067 = vsel %vm1065, %v1064, %v1062
        %v1069 = vlaneseq
        %v1070 = vshrl.u32 %v1069, 7
        %v1071 = vsub.s32 0, %v1070
        %v1072 = vrot.slane %v1060, %v1071
        %v1073 = vlaneseq
        %v1074 = vshrl.u32 %v1073, 7
        %v1075 = vsub.s32 1, %v1074
        %v1076 = vrot.slane %v1060, %v1075
        %v1079 = vmul.f32 %v1072, %v1066
        %v1080 = vmul.f32 %v1076, %v1067
        %1081 = vset.pattern.permute.xlu0 23
        %1082 = vperm.xlu0 %1081, %v283
        %v1083 = vpop.permute.xlu0 %1082
        %v1085 = vmul.f32 %v1083, %v1079
        %v1086 = vmul.f32 %v1083, %v1080
        %v1089 = vcombine.low %v1085, %v1086
        %v1091 = vadd.f32 %v1058, %v1089
        %s1092 = scalar_lea.vmem [#allocation5], 48
        %v1093 = vld [vmem:[%s1092] ss:$8 sm:$0x3]
        %1094 = vrot.lane.b32.xlu0 %v288, 94
        %v1095 = vpop.permute.xlu0 %1094
        %1096 = vrot.lane.b32.xlu0 %v304, 94
        %v1097 = vpop.permute.xlu0 %1096
        %vm1098 = vcmp.lt.s32.totalorder %v311, 94
        %v1099 = vsel %vm1098, %v1095, %v1097
        %v1100 = vsel %vm1098, %v1097, %v1095
        %v1102 = vlaneseq
        %v1103 = vshrl.u32 %v1102, 7
        %v1104 = vsub.s32 0, %v1103
        %v1105 = vrot.slane %v1093, %v1104
        %v1106 = vlaneseq
        %v1107 = vshrl.u32 %v1106, 7
        %v1108 = vsub.s32 1, %v1107
        %v1109 = vrot.slane %v1093, %v1108
        %v1112 = vmul.f32 %v1105, %v1099
        %v1113 = vmul.f32 %v1109, %v1100
        %1114 = vset.pattern.permute.xlu0 24
        %1115 = vperm.xlu0 %1114, %v283
        %v1116 = vpop.permute.xlu0 %1115
        %v1118 = vmul.f32 %v1116, %v1112
        %v1119 = vmul.f32 %v1116, %v1113
        %v1122 = vcombine.low %v1118, %v1119
        %v1124 = vadd.f32 %v1091, %v1122
        %1126 = vset.pattern.permute.xlu0 0
        %1127 = vperm.xlu0 %1126, %v286
        %v1128 = vpop.permute.xlu0 %1127
        %v1131 = vcombine.high %v1124, %v1124
        %vm1132 = vcmask 31744
        %v1134 = vsel %vm1132, %v285, 0
        %vm1136 = vcmask 1043456
        %v1137 = vsel %vm1136, %v1124, 0
        %v1139 = vsel %vm1136, %v1131, 0
        %1141 = vmatprep.subr.mxu0 0.0
        %1142 = vmatpush1.msra.mxu0 0.0
        %1143 = vmatprep.subr.mxu0 0.0
        %1144 = vmatpush1.msra.mxu0 0.0
        %1145 = vmatprep.subr.mxu0 0.0
        %1146 = vmatpush1.msra.mxu0 0.0
        %1147 = vmatprep.subr.mxu0 0.0
        %1148 = vmatpush1.msra.mxu0 0.0
        %1149 = vmatprep.subr.mxu0 0.0
        %1150 = vmatpush1.msra.mxu0 0.0
        %1151 = vmatprep.subr.mxu0 0.0
        %1152 = vmatpush1.msra.mxu0 0.0
        %1153 = vmatprep.subr.mxu0 0.0
        %1154 = vmatpush1.msra.mxu0 0.0
        %1155 = vmatprep.subr.mxu0 0.0
        %1156 = vmatpush1.msra.mxu0 0.0
        %1157 = vmatprep.subr.mxu0 0.0
        %1158 = vmatpush1.msra.mxu0 0.0
        %1159 = vmatprep.subr.mxu0 0.0
        %1160 = vmatpush1.msra.mxu0 0.0
        %1161 = vmatprep.subr.mxu0 0.0
        %1162 = vmatpush1.msra.mxu0 0.0
        %1163 = vmatprep.subr.mxu0 0.0
        %1164 = vmatpush1.msra.mxu0 0.0
        %1165 = vmatprep.subr.mxu0 0.0
        %1166 = vmatpush1.msra.mxu0 0.0
        %1167 = vmatprep.subr.mxu0 0.0
        %1168 = vmatpush1.msra.mxu0 0.0
        %1169 = vmatprep.subr.mxu0 0.0
        %1170 = vmatpush1.msra.mxu0 0.0
        %1171 = vmatprep.subr.mxu0 %v1139
        %1172 = vmatpush1.msra.mxu0 %v1137
        %1173 = vmatprep.subr.mxu0 0.0
        %1174 = vmatpush2.msra.mxu0 0.0
        %1175 = vmatprep.subr.mxu0 0.0
        %1176 = vmatpush2.msra.mxu0 0.0
        %1177 = vmatprep.subr.mxu0 0.0
        %1178 = vmatpush2.msra.mxu0 0.0
        %1179 = vmatprep.subr.mxu0 0.0
        %1180 = vmatpush2.msra.mxu0 0.0
        %1181 = vmatprep.subr.mxu0 0.0
        %1182 = vmatpush2.msra.mxu0 0.0
        %1183 = vmatprep.subr.mxu0 0.0
        %1184 = vmatpush2.msra.mxu0 0.0
        %1185 = vmatprep.subr.mxu0 0.0
        %1186 = vmatpush2.msra.mxu0 0.0
        %1187 = vmatprep.subr.mxu0 0.0
        %1188 = vmatpush2.msra.mxu0 0.0
        %1189 = vmatprep.subr.mxu0 0.0
        %1190 = vmatpush2.msra.mxu0 0.0
        %1191 = vmatprep.subr.mxu0 0.0
        %1192 = vmatpush2.msra.mxu0 0.0
        %1193 = vmatprep.subr.mxu0 0.0
        %1194 = vmatpush2.msra.mxu0 0.0
        %1195 = vmatprep.subr.mxu0 0.0
        %1196 = vmatpush2.msra.mxu0 0.0
        %1197 = vmatprep.subr.mxu0 0.0
        %1198 = vmatpush2.msra.mxu0 0.0
        %1199 = vmatprep.subr.mxu0 0.0
        %1200 = vmatpush2.msra.mxu0 0.0
        %1201 = vmatprep.subr.mxu0 0.0
        %1202 = vmatpush2.msra.mxu0 0.0
        %1203 = vmatprep.subr.mxu0 0.0
        %1204 = vmatpush2.msra.mxu0 0.0
        %1205 = vmatprep.mubr.f32.mxu0 0.0
        %1206 = vmatmul.mubr.f32.gmra.mxu0 %v1134
        %v1207 = vpop.f32.mrf.mxu0
        %v1208 = vadd.f32 %v1128, %v1207
        %v1209 = vpop.f32.mrf.mxu0
        %v1210 = vadd.f32 %v1128, %v1209
        %1211 = vdwg.mxu0
        %1212 = vst [vmem:[%s282] sm:$0xff] %v1208
        %1213 = vst [vmem:[%s282 + $0x8] sm:$0xff] %v1210
        %s1214 = sand.u32 %s163, 1
        %s1215 = scalar_lea.sflag [#allocation4], %s1214
        %s1216 = sand.u32 %s163, 1
        %s1217 = smul.addr %s1216, 16
        %s1218 = scalar_lea.vmem [#allocation7], %s1217
        // Predicated region
        $region53: #{tpu_custom_call.1} parent=43 // pred_check
          %p1219 = pneg %p173
        $region54: #{tpu_custom_call.1} parent=43 // pred_check_branch
          %1221 = sbr.rel (%p1219) target = $region56
        $region55: #{tpu_custom_call.1} parent=43 // pred_region
          %s1223 = ssub.s32 256, 256
          %1224 = vsyncadd %s1215, %s1223
          %s1225 = smul.addr %s24, 2
          %s1226 = smul.addr %s1225, 128
          %s1227 = scalar_lea.hbm %s6, %s1226
          %s1229 = sshll.u32 %s1218, 4
          %s1230 = int_to_ptr.vmem [resolvable:$true] %s1229
          %1232 = dma.vmem_to_hbm [thread:$0]  %s1230, 256, %s1227, %s1215
        $region56: #{tpu_custom_call.1} parent=43 // pred_fallthru
          _
      $region44: #{tpu_custom_call.1} parent=5 // pred_fallthru
        _
      %p1233 = scmp.le.s32.totalorder 2, %s19
      // Predicated region
      $region57: #{tpu_custom_call.1} parent=5 // pred_check
        %p1234 = pneg %p1233
      $region58: #{tpu_custom_call.1} parent=5 // pred_check_branch
        %1236 = sbr.rel (%p1234) target = $region60
      $region59: #{tpu_custom_call.1} parent=5 // pred_region
        %s1237 = ssub.s32 %s19, 2
        // Predicated region
        $region61: #{tpu_custom_call.1} parent=59 // pred_check
          %p1238 = pneg %p179
        $region62: #{tpu_custom_call.1} parent=59 // pred_check_branch
          %1240 = sbr.rel (%p1238) target = $region64
        $region63: #{tpu_custom_call.1} parent=59 // pred_region
          %s1241 = sand.u32 %s164, 1
          %s1242 = scalar_lea.sflag [#allocation4], %s1241
          %s1243 = sand.u32 %s164, 1
          %s1244 = smul.addr %s1243, 16
          %s1245 = scalar_lea.vmem [#allocation7], %s1244
          %1246 = dma.done %s1242, 256
        $region64: #{tpu_custom_call.1} parent=59 // pred_fallthru
          _
      $region60: #{tpu_custom_call.1} parent=5 // pred_fallthru
        _
    $region6: #{tpu_custom_call.1} parent=1 // loop_footer
      %s23 = sadd.s32 1, %s19
    $region7: #{tpu_custom_call.1} parent=1 // loop_footer_branch
      %18 = sbr.rel target = $region3
    $region8: #{tpu_custom_call.1} parent=1 // loop_exit
      _
    %1247 = vsyncpa [#allocation3], 1
    %s1248 = scalar_lea.sflag [#allocation3], 1
    %1249 = vsyncpa %s1248, 1
    %1250 = vsyncpa [#allocation6], 1
    %1251 = vsyncpa [#allocation4], 1
    %s1252 = scalar_lea.sflag [#allocation4], 1
    %1253 = vsyncpa %s1252, 1

</llo_original>
